<compile_context>
chip_gen: v5e
topology: v5e:2x2
jax: 0.10.0
libtpu: 0.0.40
codegen_flags: <defaults>
</compile_context>

<pallas_src>
import math
from functools import partial

import jax
import jax.numpy as jnp
from jax.experimental import pallas as pl
from jax.experimental.pallas import tpu as pltpu


_HIDDEN_DIMS = (64, 128, 256, 512, 512)
_LANE = 128            # lane width: output head is padded to a multiple of this
_MAX_BATCH_TILE = 1024  # multiple of 8; total bf16 weights ~1 MB, so even
                        # 1024-row tiles keep per-step VMEM in the low MiB.
_GRID_TARGET = 2        # v7x has 2 TensorCores: aim for >= 2 grid steps.


def _round_up(x, m):
    return ((x + m - 1) // m) * m


def _relu6(x):
    # F.relu6(x) == clamp(x, 0, 6); weakly-typed constants keep x's dtype.
    return jnp.minimum(jnp.maximum(x, 0.0), 6.0)


def _default_act_dtype():
    """Elementwise dtype for hidden activations / biases.

    bf16 on v6e/v7x (native bf16 VPU: halves VALU-slot work and intermediate
    VMEM bytes); f32 on v5e (no bf16 VPU) or if the device can't be queried.
    """
    try:
        kind = jax.devices()[0].device_kind.lower()
    except Exception:
        return jnp.bfloat16
    return jnp.float32 if "v5" in kind else jnp.bfloat16


def dqn_mlp_kernel(x_ref,
                   w1_ref, b1_ref,
                   w2_ref, b2_ref,
                   w3_ref, b3_ref,
                   w4_ref, b4_ref,
                   w5_ref, b5_ref,
                   w6_ref, b6_ref,
                   out_ref):
    """One batch-tile of the fused 6-layer DQN MLP (all params VMEM-resident)."""

    def layer(h, w_ref, b_ref):
        # bf16 matmul operands, f32 MXU accumulation.  The bias dtype sets the
        # elementwise dtype: bf16 hidden layers on v6e/v7x, f32 on v5e and for
        # the (f32-bias) output head.
        acc = jnp.dot(h.astype(w_ref.dtype), w_ref[...],
                      preferred_element_type=jnp.float32)
        return acc.astype(b_ref.dtype) + b_ref[...]

    h = x_ref[...]
    h = _relu6(layer(h, w1_ref, b1_ref))
    h = _relu6(layer(h, w2_ref, b2_ref))
    h = _relu6(layer(h, w3_ref, b3_ref))
    h = _relu6(layer(h, w4_ref, b4_ref))
    h = _relu6(layer(h, w5_ref, b5_ref))
    # Output head (network_type == 'DQN'): no activation; width is lane-padded,
    # bias is f32 so the Q-values come out of the f32 accumulator directly.
    out_ref[...] = layer(h, w6_ref, b6_ref).astype(out_ref.dtype)
    # TODO(synk): 'DuelingDQN' head (state_values + advantages - max) not
    # implemented; default network_type='DQN' path only.


@partial(jax.jit, static_argnames=("output_dim",))
def dqn_forward(x, params, output_dim):
    """Run the fused DQN MLP. x: (B, input_dim) f32 -> (B, output_dim) f32."""
    B, in_dim = x.shape
    out_dim_p = params["b6"].shape[1]  # already padded to a multiple of 128

    # Batch tile: large enough to amortize per-step pipeline overhead, split
    # into ~_GRID_TARGET steps so v7x's two TensorCores both get work, and a
    # multiple of 8 so x/out tiles stay sublane-dense (no masked stores).
    TB = min(_MAX_BATCH_TILE, max(8, _round_up(-(-B // _GRID_TARGET), 8)))
    grid_b = -(-B // TB)
    Bp = grid_b * TB
    if Bp != B:
        x = jnp.pad(x, ((0, Bp - B), (0, 0)))

    tile = lambda i: (i, 0)    # x / out: walk the batch axis
    const = lambda i: (0, 0)   # params: same block every grid step (VMEM-resident)

    layer_params = [(params[f"w{k}"], params[f"b{k}"]) for k in range(1, 7)]

    flat_args = [x]
    in_specs = [pl.BlockSpec((TB, in_dim), tile)]
    for w, b in layer_params:
        flat_args += [w, b]
        in_specs += [pl.BlockSpec(w.shape, const), pl.BlockSpec(b.shape, const)]

    dims = (in_dim,) + _HIDDEN_DIMS + (out_dim_p,)
    flops = 2 * Bp * sum(dims[i] * dims[i + 1] for i in range(len(dims) - 1))
    bytes_accessed = (
        x.size * x.dtype.itemsize
        + sum(w.size * w.dtype.itemsize + b.size * b.dtype.itemsize
              for w, b in layer_params)
        + Bp * out_dim_p * 4)

    out = pl.pallas_call(
        dqn_mlp_kernel,
        out_shape=jax.ShapeDtypeStruct((Bp, out_dim_p), jnp.float32),
        grid=(grid_b,),
        in_specs=in_specs,
        out_specs=pl.BlockSpec((TB, out_dim_p), tile),
        compiler_params=pltpu.CompilerParams(
            dimension_semantics=("parallel",)),  # v7x: shard batch over 2 TCs
        cost_estimate=pl.CostEstimate(
            flops=flops, transcendentals=0, bytes_accessed=bytes_accessed),
    )(*flat_args)

    return out[:B, :output_dim]


def init_dqn_params(key, input_dim, output_dim,
                    weight_dtype=jnp.bfloat16, act_dtype=None):
    """Deterministic PyTorch-style (uniform +/- 1/sqrt(fan_in)) init.

    Weights are returned already transposed to (in_features, out_features) and
    cast to `weight_dtype` (bf16 for MXU / DMA efficiency).  Hidden-layer
    biases are stored in `act_dtype` (bf16 on v6e/v7x, f32 on v5e) — this
    dtype also drives the in-kernel elementwise math.  The output head
    (w6, b6) is zero-padded to a 128-lane width at build time; b6 stays f32.
    """
    if act_dtype is None:
        act_dtype = _default_act_dtype()
    dims = (input_dim,) + _HIDDEN_DIMS + (output_dim,)
    out_dim_p = _round_up(output_dim, _LANE)
    params = {}
    for i in range(6):
        fan_in, fan_out = dims[i], dims[i + 1]
        key, kw, kb = jax.random.split(key, 3)
        bound = 1.0 / math.sqrt(float(fan_in))
        w = jax.random.uniform(kw, (fan_in, fan_out), jnp.float32, -bound, bound)
        b = jax.random.uniform(kb, (1, fan_out), jnp.float32, -bound, bound)
        if i == 5:  # output head: lane-pad once here, keep bias f32
            w = jnp.pad(w, ((0, 0), (0, out_dim_p - fan_out)))
            b = jnp.pad(b, ((0, 0), (0, out_dim_p - fan_out)))
            params["w6"] = w.astype(weight_dtype)
            params["b6"] = b
        else:
            params[f"w{i + 1}"] = w.astype(weight_dtype)
            params[f"b{i + 1}"] = b.astype(act_dtype)
    return params


def dqn_forward_ref(x, params, output_dim):
    """Pure-JAX reference (same bf16-weight / f32-accumulate / act-dtype math)."""
    h = x
    for i in range(1, 6):
        w, b = params[f"w{i}"], params[f"b{i}"]
        acc = jnp.dot(h.astype(w.dtype), w, preferred_element_type=jnp.float32)
        h = _relu6(acc.astype(b.dtype) + b)
    w, b = params["w6"], params["b6"]
    out = jnp.dot(h.astype(w.dtype), w, preferred_element_type=jnp.float32) + b
    return out[:, :output_dim]


if __name__ == "__main__":
    key = jax.random.PRNGKey(0)
    key, kx = jax.random.split(key)

    batch = 8
    input_dim = 16
    output_dim = 4

    params = init_dqn_params(key, input_dim, output_dim)
    x = jax.random.normal(kx, (batch, input_dim), jnp.float32)

    out = jax.block_until_ready(dqn_forward(x, params, output_dim))
    ref = dqn_forward_ref(x, params, output_dim)

    assert out.shape == (batch, output_dim)
    assert jnp.allclose(out, ref, atol=2e-2, rtol=2e-2), "mismatch vs reference"

    print("KERNEL_OK")
</pallas_src>

<mosaic_0001>
module attributes {stable_mosaic.version = 11 : i64} {
  func.func @dqn_mlp_kernel(%arg0: i32, %arg1: memref<8x16xf32, #tpu.memory_space<vmem>>, %arg2: memref<16x64xbf16, #tpu.memory_space<vmem>>, %arg3: memref<1x64xbf16, #tpu.memory_space<vmem>>, %arg4: memref<64x128xbf16, #tpu.memory_space<vmem>>, %arg5: memref<1x128xbf16, #tpu.memory_space<vmem>>, %arg6: memref<128x256xbf16, #tpu.memory_space<vmem>>, %arg7: memref<1x256xbf16, #tpu.memory_space<vmem>>, %arg8: memref<256x512xbf16, #tpu.memory_space<vmem>>, %arg9: memref<1x512xbf16, #tpu.memory_space<vmem>>, %arg10: memref<512x512xbf16, #tpu.memory_space<vmem>>, %arg11: memref<1x512xbf16, #tpu.memory_space<vmem>>, %arg12: memref<512x128xbf16, #tpu.memory_space<vmem>>, %arg13: memref<1x128xf32, #tpu.memory_space<vmem>>, %arg14: memref<8x128xf32, #tpu.memory_space<vmem>>) attributes {dimension_semantics = [#tpu.dimension_semantics<parallel>], iteration_bounds = array<i64: 1>, scalar_prefetch = 0 : i64, scratch_operands = 0 : i64, tpu.core_type = #tpu.core_type<tc>, window_params = [{transform_indices = @transform_0, window_bounds = array<i64: 8, 16>}, {pipeline_mode = #tpu.pipeline_mode<synchronous>, transform_indices = @transform_1, window_bounds = array<i64: 16, 64>}, {pipeline_mode = #tpu.pipeline_mode<synchronous>, transform_indices = @transform_2, window_bounds = array<i64: 1, 64>}, {pipeline_mode = #tpu.pipeline_mode<synchronous>, transform_indices = @transform_3, window_bounds = array<i64: 64, 128>}, {pipeline_mode = #tpu.pipeline_mode<synchronous>, transform_indices = @transform_4, window_bounds = array<i64: 1, 128>}, {pipeline_mode = #tpu.pipeline_mode<synchronous>, transform_indices = @transform_5, window_bounds = array<i64: 128, 256>}, {pipeline_mode = #tpu.pipeline_mode<synchronous>, transform_indices = @transform_6, window_bounds = array<i64: 1, 256>}, {pipeline_mode = #tpu.pipeline_mode<synchronous>, transform_indices = @transform_7, window_bounds = array<i64: 256, 512>}, {pipeline_mode = #tpu.pipeline_mode<synchronous>, transform_indices = @transform_8, window_bounds = array<i64: 1, 512>}, {pipeline_mode = #tpu.pipeline_mode<synchronous>, transform_indices = @transform_9, window_bounds = array<i64: 512, 512>}, {pipeline_mode = #tpu.pipeline_mode<synchronous>, transform_indices = @transform_10, window_bounds = array<i64: 1, 512>}, {pipeline_mode = #tpu.pipeline_mode<synchronous>, transform_indices = @transform_11, window_bounds = array<i64: 512, 128>}, {pipeline_mode = #tpu.pipeline_mode<synchronous>, transform_indices = @transform_12, window_bounds = array<i64: 1, 128>}, {transform_indices = @transform_13, window_bounds = array<i64: 8, 128>}]} {
    %c0 = arith.constant 0 : index
    %c0_0 = arith.constant 0 : index
    %0 = vector.load %arg1[%c0, %c0_0] : memref<8x16xf32, #tpu.memory_space<vmem>>, vector<8x16xf32>
    %1 = arith.truncf %0 : vector<8x16xf32> to vector<8x16xbf16>
    %c0_1 = arith.constant 0 : index
    %c0_2 = arith.constant 0 : index
    %2 = vector.load %arg2[%c0_1, %c0_2] : memref<16x64xbf16, #tpu.memory_space<vmem>>, vector<16x64xbf16>
    %cst = arith.constant dense<0.000000e+00> : vector<8x64xf32>
    %3 = tpu.matmul %1, %2, %cst {dimension_numbers = #tpu.dot_dimension_numbers<[1], [0], [0], [1], [0, 0, 1, 1], [], []>} : vector<8x16xbf16>, vector<16x64xbf16>, vector<8x64xf32> -> vector<8x64xf32>
    %4 = arith.truncf %3 : vector<8x64xf32> to vector<8x64xbf16>
    %c0_3 = arith.constant 0 : index
    %c0_4 = arith.constant 0 : index
    %5 = vector.load %arg3[%c0_3, %c0_4] : memref<1x64xbf16, #tpu.memory_space<vmem>>, vector<1x64xbf16>
    %6 = vector.broadcast %5 : vector<1x64xbf16> to vector<8x64xbf16>
    %7 = arith.addf %4, %6 : vector<8x64xbf16>
    %cst_5 = arith.constant 0.000000e+00 : bf16
    %8 = vector.broadcast %cst_5 : bf16 to vector<8x64xbf16>
    %9 = arith.maximumf %7, %8 : vector<8x64xbf16>
    %cst_6 = arith.constant 6.000000e+00 : bf16
    %10 = vector.broadcast %cst_6 : bf16 to vector<8x64xbf16>
    %11 = arith.minimumf %9, %10 : vector<8x64xbf16>
    %c0_7 = arith.constant 0 : index
    %c0_8 = arith.constant 0 : index
    %12 = vector.load %arg4[%c0_7, %c0_8] : memref<64x128xbf16, #tpu.memory_space<vmem>>, vector<64x128xbf16>
    %cst_9 = arith.constant dense<0.000000e+00> : vector<8x128xf32>
    %13 = tpu.matmul %11, %12, %cst_9 {dimension_numbers = #tpu.dot_dimension_numbers<[1], [0], [0], [1], [0, 0, 1, 1], [], []>} : vector<8x64xbf16>, vector<64x128xbf16>, vector<8x128xf32> -> vector<8x128xf32>
    %14 = arith.truncf %13 : vector<8x128xf32> to vector<8x128xbf16>
    %c0_10 = arith.constant 0 : index
    %c0_11 = arith.constant 0 : index
    %15 = vector.load %arg5[%c0_10, %c0_11] : memref<1x128xbf16, #tpu.memory_space<vmem>>, vector<1x128xbf16>
    %16 = vector.broadcast %15 : vector<1x128xbf16> to vector<8x128xbf16>
    %17 = arith.addf %14, %16 : vector<8x128xbf16>
    %cst_12 = arith.constant 0.000000e+00 : bf16
    %18 = vector.broadcast %cst_12 : bf16 to vector<8x128xbf16>
    %19 = arith.maximumf %17, %18 : vector<8x128xbf16>
    %cst_13 = arith.constant 6.000000e+00 : bf16
    %20 = vector.broadcast %cst_13 : bf16 to vector<8x128xbf16>
    %21 = arith.minimumf %19, %20 : vector<8x128xbf16>
    %c0_14 = arith.constant 0 : index
    %c0_15 = arith.constant 0 : index
    %22 = vector.load %arg6[%c0_14, %c0_15] : memref<128x256xbf16, #tpu.memory_space<vmem>>, vector<128x256xbf16>
    %cst_16 = arith.constant dense<0.000000e+00> : vector<8x256xf32>
    %23 = tpu.matmul %21, %22, %cst_16 {dimension_numbers = #tpu.dot_dimension_numbers<[1], [0], [0], [1], [0, 0, 1, 1], [], []>} : vector<8x128xbf16>, vector<128x256xbf16>, vector<8x256xf32> -> vector<8x256xf32>
    %24 = arith.truncf %23 : vector<8x256xf32> to vector<8x256xbf16>
    %c0_17 = arith.constant 0 : index
    %c0_18 = arith.constant 0 : index
    %25 = vector.load %arg7[%c0_17, %c0_18] : memref<1x256xbf16, #tpu.memory_space<vmem>>, vector<1x256xbf16>
    %26 = vector.broadcast %25 : vector<1x256xbf16> to vector<8x256xbf16>
    %27 = arith.addf %24, %26 : vector<8x256xbf16>
    %cst_19 = arith.constant 0.000000e+00 : bf16
    %28 = vector.broadcast %cst_19 : bf16 to vector<8x256xbf16>
    %29 = arith.maximumf %27, %28 : vector<8x256xbf16>
    %cst_20 = arith.constant 6.000000e+00 : bf16
    %30 = vector.broadcast %cst_20 : bf16 to vector<8x256xbf16>
    %31 = arith.minimumf %29, %30 : vector<8x256xbf16>
    %c0_21 = arith.constant 0 : index
    %c0_22 = arith.constant 0 : index
    %32 = vector.load %arg8[%c0_21, %c0_22] : memref<256x512xbf16, #tpu.memory_space<vmem>>, vector<256x512xbf16>
    %cst_23 = arith.constant dense<0.000000e+00> : vector<8x512xf32>
    %33 = tpu.matmul %31, %32, %cst_23 {dimension_numbers = #tpu.dot_dimension_numbers<[1], [0], [0], [1], [0, 0, 1, 1], [], []>} : vector<8x256xbf16>, vector<256x512xbf16>, vector<8x512xf32> -> vector<8x512xf32>
    %34 = arith.truncf %33 : vector<8x512xf32> to vector<8x512xbf16>
    %c0_24 = arith.constant 0 : index
    %c0_25 = arith.constant 0 : index
    %35 = vector.load %arg9[%c0_24, %c0_25] : memref<1x512xbf16, #tpu.memory_space<vmem>>, vector<1x512xbf16>
    %36 = vector.broadcast %35 : vector<1x512xbf16> to vector<8x512xbf16>
    %37 = arith.addf %34, %36 : vector<8x512xbf16>
    %cst_26 = arith.constant 0.000000e+00 : bf16
    %38 = vector.broadcast %cst_26 : bf16 to vector<8x512xbf16>
    %39 = arith.maximumf %37, %38 : vector<8x512xbf16>
    %cst_27 = arith.constant 6.000000e+00 : bf16
    %40 = vector.broadcast %cst_27 : bf16 to vector<8x512xbf16>
    %41 = arith.minimumf %39, %40 : vector<8x512xbf16>
    %c0_28 = arith.constant 0 : index
    %c0_29 = arith.constant 0 : index
    %42 = vector.load %arg10[%c0_28, %c0_29] : memref<512x512xbf16, #tpu.memory_space<vmem>>, vector<512x512xbf16>
    %cst_30 = arith.constant dense<0.000000e+00> : vector<8x512xf32>
    %43 = tpu.matmul %41, %42, %cst_30 {dimension_numbers = #tpu.dot_dimension_numbers<[1], [0], [0], [1], [0, 0, 1, 1], [], []>} : vector<8x512xbf16>, vector<512x512xbf16>, vector<8x512xf32> -> vector<8x512xf32>
    %44 = arith.truncf %43 : vector<8x512xf32> to vector<8x512xbf16>
    %c0_31 = arith.constant 0 : index
    %c0_32 = arith.constant 0 : index
    %45 = vector.load %arg11[%c0_31, %c0_32] : memref<1x512xbf16, #tpu.memory_space<vmem>>, vector<1x512xbf16>
    %46 = vector.broadcast %45 : vector<1x512xbf16> to vector<8x512xbf16>
    %47 = arith.addf %44, %46 : vector<8x512xbf16>
    %cst_33 = arith.constant 0.000000e+00 : bf16
    %48 = vector.broadcast %cst_33 : bf16 to vector<8x512xbf16>
    %49 = arith.maximumf %47, %48 : vector<8x512xbf16>
    %cst_34 = arith.constant 6.000000e+00 : bf16
    %50 = vector.broadcast %cst_34 : bf16 to vector<8x512xbf16>
    %51 = arith.minimumf %49, %50 : vector<8x512xbf16>
    %c0_35 = arith.constant 0 : index
    %c0_36 = arith.constant 0 : index
    %52 = vector.load %arg12[%c0_35, %c0_36] : memref<512x128xbf16, #tpu.memory_space<vmem>>, vector<512x128xbf16>
    %cst_37 = arith.constant dense<0.000000e+00> : vector<8x128xf32>
    %53 = tpu.matmul %51, %52, %cst_37 {dimension_numbers = #tpu.dot_dimension_numbers<[1], [0], [0], [1], [0, 0, 1, 1], [], []>} : vector<8x512xbf16>, vector<512x128xbf16>, vector<8x128xf32> -> vector<8x128xf32>
    %c0_38 = arith.constant 0 : index
    %c0_39 = arith.constant 0 : index
    %54 = vector.load %arg13[%c0_38, %c0_39] : memref<1x128xf32, #tpu.memory_space<vmem>>, vector<1x128xf32>
    %55 = vector.broadcast %54 : vector<1x128xf32> to vector<8x128xf32>
    %56 = arith.addf %53, %55 : vector<8x128xf32>
    %c0_40 = arith.constant 0 : index
    %c0_41 = arith.constant 0 : index
    %57 = vector.load %arg14[%c0_40, %c0_41] : memref<8x128xf32, #tpu.memory_space<vmem>>, vector<8x128xf32>
    tpu.vector_store %arg14[%c0_40, %c0_41], %56 {strides = array<i32>} : memref<8x128xf32, #tpu.memory_space<vmem>>, vector<8x128xf32>,
    return
  }
  func.func @transform_0(%arg0: i32) -> (i32, i32) {
    %c0_i32 = arith.constant 0 : i32
    %c0_i32_0 = arith.constant 0 : i32
    return %arg0, %c0_i32 : i32, i32
  }
  func.func @transform_1(%arg0: i32) -> (i32, i32) {
    %c0_i32 = arith.constant 0 : i32
    %c0_i32_0 = arith.constant 0 : i32
    %c0_i32_1 = arith.constant 0 : i32
    return %c0_i32, %c0_i32_0 : i32, i32
  }
  func.func @transform_2(%arg0: i32) -> (i32, i32) {
    %c0_i32 = arith.constant 0 : i32
    %c0_i32_0 = arith.constant 0 : i32
    %c0_i32_1 = arith.constant 0 : i32
    return %c0_i32, %c0_i32_0 : i32, i32
  }
  func.func @transform_3(%arg0: i32) -> (i32, i32) {
    %c0_i32 = arith.constant 0 : i32
    %c0_i32_0 = arith.constant 0 : i32
    %c0_i32_1 = arith.constant 0 : i32
    return %c0_i32, %c0_i32_0 : i32, i32
  }
  func.func @transform_4(%arg0: i32) -> (i32, i32) {
    %c0_i32 = arith.constant 0 : i32
    %c0_i32_0 = arith.constant 0 : i32
    %c0_i32_1 = arith.constant 0 : i32
    return %c0_i32, %c0_i32_0 : i32, i32
  }
  func.func @transform_5(%arg0: i32) -> (i32, i32) {
    %c0_i32 = arith.constant 0 : i32
    %c0_i32_0 = arith.constant 0 : i32
    %c0_i32_1 = arith.constant 0 : i32
    return %c0_i32, %c0_i32_0 : i32, i32
  }
  func.func @transform_6(%arg0: i32) -> (i32, i32) {
    %c0_i32 = arith.constant 0 : i32
    %c0_i32_0 = arith.constant 0 : i32
    %c0_i32_1 = arith.constant 0 : i32
    return %c0_i32, %c0_i32_0 : i32, i32
  }
  func.func @transform_7(%arg0: i32) -> (i32, i32) {
    %c0_i32 = arith.constant 0 : i32
    %c0_i32_0 = arith.constant 0 : i32
    %c0_i32_1 = arith.constant 0 : i32
    return %c0_i32, %c0_i32_0 : i32, i32
  }
  func.func @transform_8(%arg0: i32) -> (i32, i32) {
    %c0_i32 = arith.constant 0 : i32
    %c0_i32_0 = arith.constant 0 : i32
    %c0_i32_1 = arith.constant 0 : i32
    return %c0_i32, %c0_i32_0 : i32, i32
  }
  func.func @transform_9(%arg0: i32) -> (i32, i32) {
    %c0_i32 = arith.constant 0 : i32
    %c0_i32_0 = arith.constant 0 : i32
    %c0_i32_1 = arith.constant 0 : i32
    return %c0_i32, %c0_i32_0 : i32, i32
  }
  func.func @transform_10(%arg0: i32) -> (i32, i32) {
    %c0_i32 = arith.constant 0 : i32
    %c0_i32_0 = arith.constant 0 : i32
    %c0_i32_1 = arith.constant 0 : i32
    return %c0_i32, %c0_i32_0 : i32, i32
  }
  func.func @transform_11(%arg0: i32) -> (i32, i32) {
    %c0_i32 = arith.constant 0 : i32
    %c0_i32_0 = arith.constant 0 : i32
    %c0_i32_1 = arith.constant 0 : i32
    return %c0_i32, %c0_i32_0 : i32, i32
  }
  func.func @transform_12(%arg0: i32) -> (i32, i32) {
    %c0_i32 = arith.constant 0 : i32
    %c0_i32_0 = arith.constant 0 : i32
    %c0_i32_1 = arith.constant 0 : i32
    return %c0_i32, %c0_i32_0 : i32, i32
  }
  func.func @transform_13(%arg0: i32) -> (i32, i32) {
    %c0_i32 = arith.constant 0 : i32
    %c0_i32_0 = arith.constant 0 : i32
    return %arg0, %c0_i32 : i32, i32
  }
}

</mosaic_0001>

<llo_original>
// kernel: dqn_forward.1
$region0: #{dqn_forward.1}
  #allocation0 [shape = 'u32[]', space=smem, size = 0x4, offset = 0x4, fixed_abs, tag = 'smem constant byte address 0x4 - core index']
  #allocation1 [shape = 'u32[72,128]{1,0:T(1,128)}', space=vmem, size = 0x9000, scoped, tag = 'internal scratch']
  %s0 = inlined_call_operand.hbm [shape: f32[8,16], index: 0, kind: input, shape index: {}]
  %s1 = inlined_call_operand.hbm [shape: bf16[16,64], index: 1, kind: input, shape index: {}]
  %s2 = inlined_call_operand.hbm [shape: bf16[1,64], index: 2, kind: input, shape index: {}]
  %s3 = inlined_call_operand.hbm [shape: bf16[64,128], index: 3, kind: input, shape index: {}]
  %s4 = inlined_call_operand.hbm [shape: bf16[1,128], index: 4, kind: input, shape index: {}]
  %s5 = inlined_call_operand.hbm [shape: bf16[128,256], index: 5, kind: input, shape index: {}]
  %s6 = inlined_call_operand.hbm [shape: bf16[1,256], index: 6, kind: input, shape index: {}]
  %s7 = inlined_call_operand.hbm [shape: bf16[256,512], index: 7, kind: input, shape index: {}]
  %s8 = inlined_call_operand.hbm [shape: bf16[1,512], index: 8, kind: input, shape index: {}]
  %s9 = inlined_call_operand.hbm [shape: bf16[512,512], index: 9, kind: input, shape index: {}]
  %s10 = inlined_call_operand.vmem [shape: bf16[1,512], index: 10, kind: input, shape index: {}]
  %s11 = inlined_call_operand.hbm [shape: bf16[512,128], index: 11, kind: input, shape index: {}]
  %s12 = inlined_call_operand.vmem [shape: f32[1,128], index: 12, kind: input, shape index: {}]
  %s13 = inlined_call_operand.vmem [shape: f32[8,128], index: 13, kind: output, shape index: {}]
  %s14 = sld [smem:[#allocation0]]
  $region106: #{dqn_forward.1} parent=0
    _
  %s16 = ssub.s32 1, %s14
  %s17 = scalar_select 0, %s16, %s14
  $region1: #{dqn_forward.1} parent=0
    #allocation2 [shape = 'u8[4096]{0}', space=vmem, size = 0x1000, scoped, tag = 'input window, operand 0, single buffered']
    #allocation3 [shape = 's32[1]{0}', space=sflag, size = 0x4, scoped, tag = 'scoped memory for dqn_forward.1']
    #allocation4 [shape = 'u8[4096]{0}', space=vmem, size = 0x1000, scoped, tag = 'input window, operand 1, single buffered']
    #allocation5 [shape = 's32[1]{0}', space=sflag, size = 0x4, scoped, tag = 'scoped memory for dqn_forward.1']
    #allocation6 [shape = 'u8[512]{0}', space=vmem, size = 0x400, scoped, tag = 'input window, operand 2, single buffered']
    #allocation7 [shape = 'u8[16384]{0}', space=vmem, size = 0x4000, scoped, tag = 'input window, operand 3, single buffered']
    #allocation8 [shape = 's32[1]{0}', space=sflag, size = 0x4, scoped, tag = 'scoped memory for dqn_forward.1']
    #allocation9 [shape = 'u8[512]{0}', space=vmem, size = 0x400, scoped, tag = 'input window, operand 4, single buffered']
    #allocation10 [shape = 'u8[65536]{0}', space=vmem, size = 0x10000, scoped, tag = 'input window, operand 5, single buffered']
    #allocation11 [shape = 's32[1]{0}', space=sflag, size = 0x4, scoped, tag = 'scoped memory for dqn_forward.1']
    #allocation12 [shape = 'u8[1024]{0}', space=vmem, size = 0x400, scoped, tag = 'input window, operand 6, single buffered']
    #allocation13 [shape = 'u8[262144]{0}', space=vmem, size = 0x40000, scoped, tag = 'input window, operand 7, single buffered']
    #allocation14 [shape = 's32[1]{0}', space=sflag, size = 0x4, scoped, tag = 'scoped memory for dqn_forward.1']
    #allocation15 [shape = 'u8[2048]{0}', space=vmem, size = 0x800, scoped, tag = 'input window, operand 8, single buffered']
    #allocation16 [shape = 'u8[524288]{0}', space=vmem, size = 0x80000, scoped, tag = 'input window, operand 9, single buffered']
    #allocation17 [shape = 's32[1]{0}', space=sflag, size = 0x4, scoped, tag = 'scoped memory for dqn_forward.1']
    #allocation18 [shape = 'u8[131072]{0}', space=vmem, size = 0x20000, scoped, tag = 'input window, operand 11, single buffered']
    %18 = vsyncpa [#allocation3], 0
    %19 = vsyncpa [#allocation5], 0
    %20 = vsyncpa [#allocation8], 0
    %21 = vsyncpa [#allocation11], 0
    %22 = vsyncpa [#allocation14], 0
    %23 = vsyncpa [#allocation17], 0
    // Predicated region
    $region2: #{dqn_forward.1} parent=1 // pred_check
      _
    $region3: #{dqn_forward.1} parent=1 // pred_check_branch
      %25 = sbr.rel (0) target = $region5
    $region4: #{dqn_forward.1} parent=1 // pred_region
      %27 = vsyncadd [#allocation3], 0
      %s29 = sshll.u32 %s0, 4
      %s30 = int_to_ptr.hbm [resolvable:$true] %s29
      %s31 = sshll.u32 [#allocation2], 4
      %s32 = int_to_ptr.vmem [resolvable:$true] %s31
      %34 = dma.hbm_to_vmem [thread:$0]  %s30, 128, %s32, [#allocation3]
    $region5: #{dqn_forward.1} parent=1 // pred_fallthru
      _
    // Predicated region
    $region6: #{dqn_forward.1} parent=1 // pred_check
      _
    $region7: #{dqn_forward.1} parent=1 // pred_check_branch
      %36 = sbr.rel (0) target = $region9
    $region8: #{dqn_forward.1} parent=1 // pred_region
      %38 = vsyncadd [#allocation5], 0
      %s39 = sshll.u32 %s1, 4
      %s40 = int_to_ptr.hbm [resolvable:$true] %s39
      %s41 = sshll.u32 [#allocation4], 4
      %s42 = int_to_ptr.vmem [resolvable:$true] %s41
      %47 = dma.hbm_to_vmem [thread:$0]  %s40, 128, %s42, [#allocation5], 64, 64, 4
    $region9: #{dqn_forward.1} parent=1 // pred_fallthru
      _
    // Predicated region
    $region10: #{dqn_forward.1} parent=1 // pred_check
      _
    $region11: #{dqn_forward.1} parent=1 // pred_check_branch
      %49 = sbr.rel (0) target = $region13
    $region12: #{dqn_forward.1} parent=1 // pred_region
      %51 = vsyncadd [#allocation5], 0
      %s53 = sshll.u32 %s2, 4
      %s54 = int_to_ptr.hbm [resolvable:$true] %s53
      %s55 = sshll.u32 [#allocation6], 4
      %s56 = int_to_ptr.vmem [resolvable:$true] %s55
      %58 = dma.hbm_to_vmem [thread:$0]  %s54, 16, %s56, [#allocation5]
    $region13: #{dqn_forward.1} parent=1 // pred_fallthru
      _
    // Predicated region
    $region14: #{dqn_forward.1} parent=1 // pred_check
      _
    $region15: #{dqn_forward.1} parent=1 // pred_check_branch
      %60 = sbr.rel (0) target = $region17
    $region16: #{dqn_forward.1} parent=1 // pred_region
      %62 = vsyncadd [#allocation8], 0
      %s63 = sshll.u32 %s3, 4
      %s64 = int_to_ptr.hbm [resolvable:$true] %s63
      %s65 = sshll.u32 [#allocation7], 4
      %s66 = int_to_ptr.vmem [resolvable:$true] %s65
      %71 = dma.hbm_to_vmem [thread:$0]  %s64, 512, %s66, [#allocation8], 64, 64, 4
    $region17: #{dqn_forward.1} parent=1 // pred_fallthru
      _
    // Predicated region
    $region18: #{dqn_forward.1} parent=1 // pred_check
      _
    $region19: #{dqn_forward.1} parent=1 // pred_check_branch
      %73 = sbr.rel (0) target = $region21
    $region20: #{dqn_forward.1} parent=1 // pred_region
      %75 = vsyncadd [#allocation8], 0
      %s77 = sshll.u32 %s4, 4
      %s78 = int_to_ptr.hbm [resolvable:$true] %s77
      %s79 = sshll.u32 [#allocation9], 4
      %s80 = int_to_ptr.vmem [resolvable:$true] %s79
      %82 = dma.hbm_to_vmem [thread:$0]  %s78, 16, %s80, [#allocation8]
    $region21: #{dqn_forward.1} parent=1 // pred_fallthru
      _
    // Predicated region
    $region22: #{dqn_forward.1} parent=1 // pred_check
      _
    $region23: #{dqn_forward.1} parent=1 // pred_check_branch
      %84 = sbr.rel (0) target = $region25
    $region24: #{dqn_forward.1} parent=1 // pred_region
      %86 = vsyncadd [#allocation11], 0
      %s87 = sshll.u32 %s5, 4
      %s88 = int_to_ptr.hbm [resolvable:$true] %s87
      %s89 = sshll.u32 [#allocation10], 4
      %s90 = int_to_ptr.vmem [resolvable:$true] %s89
      %95 = dma.hbm_to_vmem [thread:$0]  %s88, 2048, %s90, [#allocation11], 128, 128, 8
    $region25: #{dqn_forward.1} parent=1 // pred_fallthru
      _
    // Predicated region
    $region26: #{dqn_forward.1} parent=1 // pred_check
      _
    $region27: #{dqn_forward.1} parent=1 // pred_check_branch
      %97 = sbr.rel (0) target = $region29
    $region28: #{dqn_forward.1} parent=1 // pred_region
      %99 = vsyncadd [#allocation11], 0
      %s101 = sshll.u32 %s6, 4
      %s102 = int_to_ptr.hbm [resolvable:$true] %s101
      %s103 = sshll.u32 [#allocation12], 4
      %s104 = int_to_ptr.vmem [resolvable:$true] %s103
      %106 = dma.hbm_to_vmem [thread:$0]  %s102, 32, %s104, [#allocation11]
    $region29: #{dqn_forward.1} parent=1 // pred_fallthru
      _
    // Predicated region
    $region30: #{dqn_forward.1} parent=1 // pred_check
      _
    $region31: #{dqn_forward.1} parent=1 // pred_check_branch
      %108 = sbr.rel (0) target = $region33
    $region32: #{dqn_forward.1} parent=1 // pred_region
      %110 = vsyncadd [#allocation14], 0
      %s111 = sshll.u32 %s7, 4
      %s112 = int_to_ptr.hbm [resolvable:$true] %s111
      %s113 = sshll.u32 [#allocation13], 4
      %s114 = int_to_ptr.vmem [resolvable:$true] %s113
      %119 = dma.hbm_to_vmem [thread:$0]  %s112, 8192, %s114, [#allocation14], 256, 256, 16
    $region33: #{dqn_forward.1} parent=1 // pred_fallthru
      _
    // Predicated region
    $region34: #{dqn_forward.1} parent=1 // pred_check
      _
    $region35: #{dqn_forward.1} parent=1 // pred_check_branch
      %121 = sbr.rel (0) target = $region37
    $region36: #{dqn_forward.1} parent=1 // pred_region
      %123 = vsyncadd [#allocation14], 0
      %s125 = sshll.u32 %s8, 4
      %s126 = int_to_ptr.hbm [resolvable:$true] %s125
      %s127 = sshll.u32 [#allocation15], 4
      %s128 = int_to_ptr.vmem [resolvable:$true] %s127
      %130 = dma.hbm_to_vmem [thread:$0]  %s126, 64, %s128, [#allocation14]
    $region37: #{dqn_forward.1} parent=1 // pred_fallthru
      _
    // Predicated region
    $region38: #{dqn_forward.1} parent=1 // pred_check
      _
    $region39: #{dqn_forward.1} parent=1 // pred_check_branch
      %132 = sbr.rel (0) target = $region41
    $region40: #{dqn_forward.1} parent=1 // pred_region
      %134 = vsyncadd [#allocation17], 0
      %s135 = sshll.u32 %s9, 4
      %s136 = int_to_ptr.hbm [resolvable:$true] %s135
      %s137 = sshll.u32 [#allocation16], 4
      %s138 = int_to_ptr.vmem [resolvable:$true] %s137
      %143 = dma.hbm_to_vmem [thread:$0]  %s136, 16384, %s138, [#allocation17], 256, 256, 16
    $region41: #{dqn_forward.1} parent=1 // pred_fallthru
      _
    // Predicated region
    $region42: #{dqn_forward.1} parent=1 // pred_check
      _
    $region43: #{dqn_forward.1} parent=1 // pred_check_branch
      %145 = sbr.rel (0) target = $region45
    $region44: #{dqn_forward.1} parent=1 // pred_region
      _
    $region45: #{dqn_forward.1} parent=1 // pred_fallthru
      _
    // Predicated region
    $region46: #{dqn_forward.1} parent=1 // pred_check
      _
    $region47: #{dqn_forward.1} parent=1 // pred_check_branch
      %147 = sbr.rel (0) target = $region49
    $region48: #{dqn_forward.1} parent=1 // pred_region
      %149 = vsyncadd [#allocation17], 0
      %s150 = sshll.u32 %s11, 4
      %s151 = int_to_ptr.hbm [resolvable:$true] %s150
      %s152 = sshll.u32 [#allocation18], 4
      %s153 = int_to_ptr.vmem [resolvable:$true] %s152
      %158 = dma.hbm_to_vmem [thread:$0]  %s151, 4096, %s153, [#allocation17], 64, 64, 4
    $region49: #{dqn_forward.1} parent=1 // pred_fallthru
      _
    // Predicated region
    $region50: #{dqn_forward.1} parent=1 // pred_check
      _
    $region51: #{dqn_forward.1} parent=1 // pred_check_branch
      %160 = sbr.rel (0) target = $region53
    $region52: #{dqn_forward.1} parent=1 // pred_region
      _
    $region53: #{dqn_forward.1} parent=1 // pred_fallthru
      _
    // Predicated region
    $region54: #{dqn_forward.1} parent=1 // pred_check
      _
    $region55: #{dqn_forward.1} parent=1 // pred_check_branch
      %162 = sbr.rel (0) target = $region57
    $region56: #{dqn_forward.1} parent=1 // pred_region
      %164 = dma.done [#allocation3], 128
    $region57: #{dqn_forward.1} parent=1 // pred_fallthru
      _
    // Predicated region
    $region58: #{dqn_forward.1} parent=1 // pred_check
      _
    $region59: #{dqn_forward.1} parent=1 // pred_check_branch
      %166 = sbr.rel (0) target = $region61
    $region60: #{dqn_forward.1} parent=1 // pred_region
      %168 = dma.done [#allocation5], 128
    $region61: #{dqn_forward.1} parent=1 // pred_fallthru
      _
    // Predicated region
    $region62: #{dqn_forward.1} parent=1 // pred_check
      _
    $region63: #{dqn_forward.1} parent=1 // pred_check_branch
      %170 = sbr.rel (0) target = $region65
    $region64: #{dqn_forward.1} parent=1 // pred_region
      %172 = dma.done [#allocation5], 16
    $region65: #{dqn_forward.1} parent=1 // pred_fallthru
      _
    // Predicated region
    $region66: #{dqn_forward.1} parent=1 // pred_check
      _
    $region67: #{dqn_forward.1} parent=1 // pred_check_branch
      %174 = sbr.rel (0) target = $region69
    $region68: #{dqn_forward.1} parent=1 // pred_region
      %176 = dma.done [#allocation8], 512
    $region69: #{dqn_forward.1} parent=1 // pred_fallthru
      _
    // Predicated region
    $region70: #{dqn_forward.1} parent=1 // pred_check
      _
    $region71: #{dqn_forward.1} parent=1 // pred_check_branch
      %178 = sbr.rel (0) target = $region73
    $region72: #{dqn_forward.1} parent=1 // pred_region
      %180 = dma.done [#allocation8], 16
    $region73: #{dqn_forward.1} parent=1 // pred_fallthru
      _
    // Predicated region
    $region74: #{dqn_forward.1} parent=1 // pred_check
      _
    $region75: #{dqn_forward.1} parent=1 // pred_check_branch
      %182 = sbr.rel (0) target = $region77
    $region76: #{dqn_forward.1} parent=1 // pred_region
      %184 = dma.done [#allocation11], 2048
    $region77: #{dqn_forward.1} parent=1 // pred_fallthru
      _
    // Predicated region
    $region78: #{dqn_forward.1} parent=1 // pred_check
      _
    $region79: #{dqn_forward.1} parent=1 // pred_check_branch
      %186 = sbr.rel (0) target = $region81
    $region80: #{dqn_forward.1} parent=1 // pred_region
      %188 = dma.done [#allocation11], 32
    $region81: #{dqn_forward.1} parent=1 // pred_fallthru
      _
    // Predicated region
    $region82: #{dqn_forward.1} parent=1 // pred_check
      _
    $region83: #{dqn_forward.1} parent=1 // pred_check_branch
      %190 = sbr.rel (0) target = $region85
    $region84: #{dqn_forward.1} parent=1 // pred_region
      %192 = dma.done [#allocation14], 8192
    $region85: #{dqn_forward.1} parent=1 // pred_fallthru
      _
    // Predicated region
    $region86: #{dqn_forward.1} parent=1 // pred_check
      _
    $region87: #{dqn_forward.1} parent=1 // pred_check_branch
      %194 = sbr.rel (0) target = $region89
    $region88: #{dqn_forward.1} parent=1 // pred_region
      %196 = dma.done [#allocation14], 64
    $region89: #{dqn_forward.1} parent=1 // pred_fallthru
      _
    // Predicated region
    $region90: #{dqn_forward.1} parent=1 // pred_check
      _
    $region91: #{dqn_forward.1} parent=1 // pred_check_branch
      %198 = sbr.rel (0) target = $region93
    $region92: #{dqn_forward.1} parent=1 // pred_region
      %200 = dma.done [#allocation17], 16384
    $region93: #{dqn_forward.1} parent=1 // pred_fallthru
      _
    // Predicated region
    $region94: #{dqn_forward.1} parent=1 // pred_check
      _
    $region95: #{dqn_forward.1} parent=1 // pred_check_branch
      %202 = sbr.rel (0) target = $region97
    $region96: #{dqn_forward.1} parent=1 // pred_region
      %204 = dma.done [#allocation17], 4096
    $region97: #{dqn_forward.1} parent=1 // pred_fallthru
      _
    %v206 = vld [vmem:[#allocation2] sm:$0xff]
    %v207 = vpack.c.bf16 %v206, %v206
    %v208 = vld [vmem:[#allocation4] sm:$0xf]
    %v209 = vld [vmem:[#allocation4 + $0x4] sm:$0xf]
    %v212 = vunpack.c.l.b16 %v208
    %v213 = vunpack.c.l.b16 %v209
    %v214 = vpack.c.b16 %v213, %v212
    %vm216 = vcmask 130048
    %v218 = vsel %vm216, %v207, 0
    %220 = vmatpush.bf16.msra.mxu0 0
    %221 = vmatpush.bf16.msra.mxu0 0
    %222 = vmatpush.bf16.msra.mxu0 0
    %223 = vmatpush.bf16.msra.mxu0 0
    %224 = vmatpush.bf16.msra.mxu0 0
    %225 = vmatpush.bf16.msra.mxu0 0
    %226 = vmatpush.bf16.msra.mxu0 0
    %227 = vmatpush.bf16.msra.mxu0 %v214
    %228 = vmatmul.bf16.gmra.mxu0 %v218
    %v229 = vpop.f32.mrf.mxu0
    %v230 = vadd.f32 0.0, %v229
    %v231 = vpop.f32.mrf.mxu0
    %232 = vdwg.mxu0
    %v233 = vpack.c.bf16 %v230, %v230
    %v234 = vld [vmem:[#allocation6] sm:$0x1]
    %v236 = vpack.i.b16 %v234, %v234
    %v238 = vperm.slane %v236, 0
    %v239 = vunpack.c.l.bf16 %v233
    %v240 = vunpack.c.l.bf16 %v238
    %v241 = vadd.f32 %v239, %v240
    %v242 = vpack.c.bf16 %v241, %v241
    %v243 = vunpack.c.l.bf16 %v242
    %v244 = vmax.f32 %v243, 0.0
    %v245 = vpack.c.bf16 %v244, %v244
    %v246 = vunpack.c.l.bf16 %v245
    %v247 = vmin.f32 %v246, 6.0
    %v248 = vpack.c.bf16 %v247, %v247
    %v249 = vld [vmem:[#allocation7] sm:$0xf]
    %v250 = vld [vmem:[#allocation7 + $0x4] sm:$0xf]
    %v251 = vld [vmem:[#allocation7 + $0x8] sm:$0xf]
    %v252 = vld [vmem:[#allocation7 + $0xc] sm:$0xf]
    %v253 = vld [vmem:[#allocation7 + $0x10] sm:$0xf]
    %v254 = vld [vmem:[#allocation7 + $0x14] sm:$0xf]
    %v255 = vld [vmem:[#allocation7 + $0x18] sm:$0xf]
    %v256 = vld [vmem:[#allocation7 + $0x1c] sm:$0xf]
    %v265 = vunpack.c.l.b16 %v249
    %v266 = vunpack.c.l.b16 %v250
    %v267 = vunpack.c.l.b16 %v251
    %v268 = vunpack.c.l.b16 %v252
    %v269 = vunpack.c.l.b16 %v253
    %v270 = vunpack.c.l.b16 %v254
    %v271 = vunpack.c.l.b16 %v255
    %v272 = vunpack.c.l.b16 %v256
    %v273 = vpack.c.b16 %v266, %v265
    %v274 = vpack.c.b16 %v268, %v267
    %v275 = vpack.c.b16 %v270, %v269
    %v276 = vpack.c.b16 %v272, %v271
    %vm281 = vcmask 523264
    %v283 = vsel %vm281, %v248, 0
    %285 = vmatpush.bf16.msra.mxu0 0
    %286 = vmatpush.bf16.msra.mxu0 0
    %287 = vmatpush.bf16.msra.mxu0 0
    %288 = vmatpush.bf16.msra.mxu0 0
    %289 = vmatpush.bf16.msra.mxu0 %v276
    %290 = vmatpush.bf16.msra.mxu0 %v275
    %291 = vmatpush.bf16.msra.mxu0 %v274
    %292 = vmatpush.bf16.msra.mxu0 %v273
    %293 = vmatmul.bf16.gmra.mxu0 %v283
    %v294 = vpop.f32.mrf.mxu0
    %v295 = vadd.f32 0.0, %v294
    %v296 = vpop.f32.mrf.mxu0
    %297 = vdwg.mxu0
    %v298 = vpack.c.bf16 %v295, %v295
    %v299 = vld [vmem:[#allocation9] sm:$0x1]
    %v301 = vpack.i.b16 %v299, %v299
    %v303 = vperm.slane %v301, 0
    %v304 = vunpack.c.l.bf16 %v298
    %v305 = vunpack.c.l.bf16 %v303
    %v306 = vadd.f32 %v304, %v305
    %v307 = vpack.c.bf16 %v306, %v306
    %v308 = vunpack.c.l.bf16 %v307
    %v309 = vmax.f32 %v308, 0.0
    %v310 = vpack.c.bf16 %v309, %v309
    %v311 = vunpack.c.l.bf16 %v310
    %v312 = vmin.f32 %v311, 6.0
    %v313 = vpack.c.bf16 %v312, %v312
    %v314 = vld [vmem:[#allocation10] sm:$0xff]
    %v315 = vld [vmem:[#allocation10 + $0x8] sm:$0xff]
    %v316 = vld [vmem:[#allocation10 + $0x10] sm:$0xff]
    %v317 = vld [vmem:[#allocation10 + $0x18] sm:$0xff]
    %v318 = vld [vmem:[#allocation10 + $0x20] sm:$0xff]
    %v319 = vld [vmem:[#allocation10 + $0x28] sm:$0xff]
    %v320 = vld [vmem:[#allocation10 + $0x30] sm:$0xff]
    %v321 = vld [vmem:[#allocation10 + $0x38] sm:$0xff]
    %v322 = vld [vmem:[#allocation10 + $0x40] sm:$0xff]
    %v323 = vld [vmem:[#allocation10 + $0x48] sm:$0xff]
    %v324 = vld [vmem:[#allocation10 + $0x50] sm:$0xff]
    %v325 = vld [vmem:[#allocation10 + $0x58] sm:$0xff]
    %v326 = vld [vmem:[#allocation10 + $0x60] sm:$0xff]
    %v327 = vld [vmem:[#allocation10 + $0x68] sm:$0xff]
    %v328 = vld [vmem:[#allocation10 + $0x70] sm:$0xff]
    %v329 = vld [vmem:[#allocation10 + $0x78] sm:$0xff]
    %v346 = vunpack.c.l.b16 %v314
    %v347 = vunpack.c.h.b16 %v314
    %v348 = vunpack.c.l.b16 %v315
    %v349 = vunpack.c.h.b16 %v315
    %v350 = vunpack.c.l.b16 %v316
    %v351 = vunpack.c.h.b16 %v316
    %v352 = vunpack.c.l.b16 %v317
    %v353 = vunpack.c.h.b16 %v317
    %v354 = vunpack.c.l.b16 %v318
    %v355 = vunpack.c.h.b16 %v318
    %v356 = vunpack.c.l.b16 %v319
    %v357 = vunpack.c.h.b16 %v319
    %v358 = vunpack.c.l.b16 %v320
    %v359 = vunpack.c.h.b16 %v320
    %v360 = vunpack.c.l.b16 %v321
    %v361 = vunpack.c.h.b16 %v321
    %v362 = vunpack.c.l.b16 %v322
    %v363 = vunpack.c.h.b16 %v322
    %v364 = vunpack.c.l.b16 %v323
    %v365 = vunpack.c.h.b16 %v323
    %v366 = vunpack.c.l.b16 %v324
    %v367 = vunpack.c.h.b16 %v324
    %v368 = vunpack.c.l.b16 %v325
    %v369 = vunpack.c.h.b16 %v325
    %v370 = vunpack.c.l.b16 %v326
    %v371 = vunpack.c.h.b16 %v326
    %v372 = vunpack.c.l.b16 %v327
    %v373 = vunpack.c.h.b16 %v327
    %v374 = vunpack.c.l.b16 %v328
    %v375 = vunpack.c.h.b16 %v328
    %v376 = vunpack.c.l.b16 %v329
    %v377 = vunpack.c.h.b16 %v329
    %v378 = vpack.c.b16 %v348, %v346
    %v379 = vpack.c.b16 %v349, %v347
    %v380 = vpack.c.b16 %v352, %v350
    %v381 = vpack.c.b16 %v353, %v351
    %v382 = vpack.c.b16 %v356, %v354
    %v383 = vpack.c.b16 %v357, %v355
    %v384 = vpack.c.b16 %v360, %v358
    %v385 = vpack.c.b16 %v361, %v359
    %v386 = vpack.c.b16 %v364, %v362
    %v387 = vpack.c.b16 %v365, %v363
    %v388 = vpack.c.b16 %v368, %v366
    %v389 = vpack.c.b16 %v369, %v367
    %v390 = vpack.c.b16 %v372, %v370
    %v391 = vpack.c.b16 %v373, %v371
    %v392 = vpack.c.b16 %v376, %v374
    %v393 = vpack.c.b16 %v377, %v375
    %410 = vmatpush.bf16.msra.mxu0 %v392
    %411 = vmatpush.bf16.msra.mxu0 %v390
    %412 = vmatpush.bf16.msra.mxu0 %v388
    %413 = vmatpush.bf16.msra.mxu0 %v386
    %414 = vmatpush.bf16.msra.mxu0 %v384
    %415 = vmatpush.bf16.msra.mxu0 %v382
    %416 = vmatpush.bf16.msra.mxu0 %v380
    %417 = vmatpush.bf16.msra.mxu0 %v378
    %418 = vmatmul.bf16.gmra.mxu0 %v313
    %v419 = vpop.f32.mrf.mxu0
    %v420 = vadd.f32 0.0, %v419
    %v421 = vpop.f32.mrf.mxu0
    %422 = vdwg.mxu0
    %423 = vmatpush.bf16.msra.mxu0 %v393
    %424 = vmatpush.bf16.msra.mxu0 %v391
    %425 = vmatpush.bf16.msra.mxu0 %v389
    %426 = vmatpush.bf16.msra.mxu0 %v387
    %427 = vmatpush.bf16.msra.mxu0 %v385
    %428 = vmatpush.bf16.msra.mxu0 %v383
    %429 = vmatpush.bf16.msra.mxu0 %v381
    %430 = vmatpush.bf16.msra.mxu0 %v379
    %431 = vmatmul.bf16.gmra.mxu0 %v313
    %v432 = vpop.f32.mrf.mxu0
    %v433 = vadd.f32 0.0, %v432
    %v434 = vpop.f32.mrf.mxu0
    %435 = vdwg.mxu0
    %v436 = vpack.c.bf16 %v433, %v420
    %v437 = vld [vmem:[#allocation12] sm:$0x3]
    %439 = vst [vmem:[#allocation1] ss:$9 sm:$0xff] %v437
    %v440 = vld [vmem:[#allocation1] sm:$0xff]
    %v441 = vld [vmem:[#allocation1 + $0x9] sm:$0xff]
    %v442 = vpack.i.b16 %v440, %v440
    %v444 = vperm.slane %v442, 0
    %v445 = vpack.i.b16 %v441, %v441
    %v447 = vperm.slane %v445, 0
    %v448 = vunpack.c.l.bf16 %v436
    %v449 = vunpack.c.h.bf16 %v436
    %v450 = vunpack.c.l.bf16 %v444
    %v451 = vunpack.c.l.bf16 %v447
    %v452 = vadd.f32 %v448, %v450
    %v453 = vadd.f32 %v449, %v451
    %v454 = vpack.c.bf16 %v453, %v452
    %v455 = vunpack.c.l.bf16 %v454
    %v456 = vunpack.c.h.bf16 %v454
    %v457 = vmax.f32 %v455, 0.0
    %v458 = vmax.f32 %v456, 0.0
    %v459 = vpack.c.bf16 %v458, %v457
    %v460 = vunpack.c.l.bf16 %v459
    %v461 = vunpack.c.h.bf16 %v459
    %v462 = vmin.f32 %v460, 6.0
    %v463 = vmin.f32 %v461, 6.0
    %v464 = vpack.c.bf16 %v462, %v462
    %v465 = vpack.c.bf16 %v463, %v463
    %v466 = vld [vmem:[#allocation13] sm:$0xff]
    %v467 = vld [vmem:[#allocation13 + $0x8] sm:$0xff]
    %v468 = vld [vmem:[#allocation13 + $0x10] sm:$0xff]
    %v469 = vld [vmem:[#allocation13 + $0x18] sm:$0xff]
    %v470 = vld [vmem:[#allocation13 + $0x20] sm:$0xff]
    %v471 = vld [vmem:[#allocation13 + $0x28] sm:$0xff]
    %v472 = vld [vmem:[#allocation13 + $0x30] sm:$0xff]
    %v473 = vld [vmem:[#allocation13 + $0x38] sm:$0xff]
    %v474 = vld [vmem:[#allocation13 + $0x40] sm:$0xff]
    %v475 = vld [vmem:[#allocation13 + $0x48] sm:$0xff]
    %v476 = vld [vmem:[#allocation13 + $0x50] sm:$0xff]
    %v477 = vld [vmem:[#allocation13 + $0x58] sm:$0xff]
    %v478 = vld [vmem:[#allocation13 + $0x60] sm:$0xff]
    %v479 = vld [vmem:[#allocation13 + $0x68] sm:$0xff]
    %v480 = vld [vmem:[#allocation13 + $0x70] sm:$0xff]
    %v481 = vld [vmem:[#allocation13 + $0x78] sm:$0xff]
    %v482 = vld [vmem:[#allocation13 + $0x80] sm:$0xff]
    %v483 = vld [vmem:[#allocation13 + $0x88] sm:$0xff]
    %v484 = vld [vmem:[#allocation13 + $0x90] sm:$0xff]
    %v485 = vld [vmem:[#allocation13 + $0x98] sm:$0xff]
    %v486 = vld [vmem:[#allocation13 + $0xa0] sm:$0xff]
    %v487 = vld [vmem:[#allocation13 + $0xa8] sm:$0xff]
    %v488 = vld [vmem:[#allocation13 + $0xb0] sm:$0xff]
    %v489 = vld [vmem:[#allocation13 + $0xb8] sm:$0xff]
    %v490 = vld [vmem:[#allocation13 + $0xc0] sm:$0xff]
    %v491 = vld [vmem:[#allocation13 + $0xc8] sm:$0xff]
    %v492 = vld [vmem:[#allocation13 + $0xd0] sm:$0xff]
    %v493 = vld [vmem:[#allocation13 + $0xd8] sm:$0xff]
    %v494 = vld [vmem:[#allocation13 + $0xe0] sm:$0xff]
    %v495 = vld [vmem:[#allocation13 + $0xe8] sm:$0xff]
    %v496 = vld [vmem:[#allocation13 + $0xf0] sm:$0xff]
    %v497 = vld [vmem:[#allocation13 + $0xf8] sm:$0xff]
    %v498 = vld [vmem:[#allocation13 + $0x100] sm:$0xff]
    %v499 = vld [vmem:[#allocation13 + $0x108] sm:$0xff]
    %v500 = vld [vmem:[#allocation13 + $0x110] sm:$0xff]
    %v501 = vld [vmem:[#allocation13 + $0x118] sm:$0xff]
    %v502 = vld [vmem:[#allocation13 + $0x120] sm:$0xff]
    %v503 = vld [vmem:[#allocation13 + $0x128] sm:$0xff]
    %v504 = vld [vmem:[#allocation13 + $0x130] sm:$0xff]
    %v505 = vld [vmem:[#allocation13 + $0x138] sm:$0xff]
    %v506 = vld [vmem:[#allocation13 + $0x140] sm:$0xff]
    %v507 = vld [vmem:[#allocation13 + $0x148] sm:$0xff]
    %v508 = vld [vmem:[#allocation13 + $0x150] sm:$0xff]
    %v509 = vld [vmem:[#allocation13 + $0x158] sm:$0xff]
    %v510 = vld [vmem:[#allocation13 + $0x160] sm:$0xff]
    %v511 = vld [vmem:[#allocation13 + $0x168] sm:$0xff]
    %v512 = vld [vmem:[#allocation13 + $0x170] sm:$0xff]
    %v513 = vld [vmem:[#allocation13 + $0x178] sm:$0xff]
    %v514 = vld [vmem:[#allocation13 + $0x180] sm:$0xff]
    %v515 = vld [vmem:[#allocation13 + $0x188] sm:$0xff]
    %v516 = vld [vmem:[#allocation13 + $0x190] sm:$0xff]
    %v517 = vld [vmem:[#allocation13 + $0x198] sm:$0xff]
    %v518 = vld [vmem:[#allocation13 + $0x1a0] sm:$0xff]
    %v519 = vld [vmem:[#allocation13 + $0x1a8] sm:$0xff]
    %v520 = vld [vmem:[#allocation13 + $0x1b0] sm:$0xff]
    %v521 = vld [vmem:[#allocation13 + $0x1b8] sm:$0xff]
    %v522 = vld [vmem:[#allocation13 + $0x1c0] sm:$0xff]
    %v523 = vld [vmem:[#allocation13 + $0x1c8] sm:$0xff]
    %v524 = vld [vmem:[#allocation13 + $0x1d0] sm:$0xff]
    %v525 = vld [vmem:[#allocation13 + $0x1d8] sm:$0xff]
    %v526 = vld [vmem:[#allocation13 + $0x1e0] sm:$0xff]
    %v527 = vld [vmem:[#allocation13 + $0x1e8] sm:$0xff]
    %v528 = vld [vmem:[#allocation13 + $0x1f0] sm:$0xff]
    %v529 = vld [vmem:[#allocation13 + $0x1f8] sm:$0xff]
    %v594 = vunpack.c.l.b16 %v466
    %v595 = vunpack.c.h.b16 %v466
    %v596 = vunpack.c.l.b16 %v467
    %v597 = vunpack.c.h.b16 %v467
    %v598 = vunpack.c.l.b16 %v468
    %v599 = vunpack.c.h.b16 %v468
    %v600 = vunpack.c.l.b16 %v469
    %v601 = vunpack.c.h.b16 %v469
    %v602 = vunpack.c.l.b16 %v470
    %v603 = vunpack.c.h.b16 %v470
    %v604 = vunpack.c.l.b16 %v471
    %v605 = vunpack.c.h.b16 %v471
    %v606 = vunpack.c.l.b16 %v472
    %v607 = vunpack.c.h.b16 %v472
    %v608 = vunpack.c.l.b16 %v473
    %v609 = vunpack.c.h.b16 %v473
    %v610 = vunpack.c.l.b16 %v474
    %v611 = vunpack.c.h.b16 %v474
    %v612 = vunpack.c.l.b16 %v475
    %v613 = vunpack.c.h.b16 %v475
    %v614 = vunpack.c.l.b16 %v476
    %v615 = vunpack.c.h.b16 %v476
    %v616 = vunpack.c.l.b16 %v477
    %v617 = vunpack.c.h.b16 %v477
    %v618 = vunpack.c.l.b16 %v478
    %v619 = vunpack.c.h.b16 %v478
    %v620 = vunpack.c.l.b16 %v479
    %v621 = vunpack.c.h.b16 %v479
    %v622 = vunpack.c.l.b16 %v480
    %v623 = vunpack.c.h.b16 %v480
    %v624 = vunpack.c.l.b16 %v481
    %v625 = vunpack.c.h.b16 %v481
    %v626 = vunpack.c.l.b16 %v482
    %v627 = vunpack.c.h.b16 %v482
    %v628 = vunpack.c.l.b16 %v483
    %v629 = vunpack.c.h.b16 %v483
    %v630 = vunpack.c.l.b16 %v484
    %v631 = vunpack.c.h.b16 %v484
    %v632 = vunpack.c.l.b16 %v485
    %v633 = vunpack.c.h.b16 %v485
    %v634 = vunpack.c.l.b16 %v486
    %v635 = vunpack.c.h.b16 %v486
    %v636 = vunpack.c.l.b16 %v487
    %v637 = vunpack.c.h.b16 %v487
    %v638 = vunpack.c.l.b16 %v488
    %v639 = vunpack.c.h.b16 %v488
    %v640 = vunpack.c.l.b16 %v489
    %v641 = vunpack.c.h.b16 %v489
    %v642 = vunpack.c.l.b16 %v490
    %v643 = vunpack.c.h.b16 %v490
    %v644 = vunpack.c.l.b16 %v491
    %v645 = vunpack.c.h.b16 %v491
    %v646 = vunpack.c.l.b16 %v492
    %v647 = vunpack.c.h.b16 %v492
    %v648 = vunpack.c.l.b16 %v493
    %v649 = vunpack.c.h.b16 %v493
    %v650 = vunpack.c.l.b16 %v494
    %v651 = vunpack.c.h.b16 %v494
    %v652 = vunpack.c.l.b16 %v495
    %v653 = vunpack.c.h.b16 %v495
    %v654 = vunpack.c.l.b16 %v496
    %v655 = vunpack.c.h.b16 %v496
    %v656 = vunpack.c.l.b16 %v497
    %v657 = vunpack.c.h.b16 %v497
    %v658 = vunpack.c.l.b16 %v498
    %v659 = vunpack.c.h.b16 %v498
    %v660 = vunpack.c.l.b16 %v499
    %v661 = vunpack.c.h.b16 %v499
    %v662 = vunpack.c.l.b16 %v500
    %v663 = vunpack.c.h.b16 %v500
    %v664 = vunpack.c.l.b16 %v501
    %v665 = vunpack.c.h.b16 %v501
    %v666 = vunpack.c.l.b16 %v502
    %v667 = vunpack.c.h.b16 %v502
    %v668 = vunpack.c.l.b16 %v503
    %v669 = vunpack.c.h.b16 %v503
    %v670 = vunpack.c.l.b16 %v504
    %v671 = vunpack.c.h.b16 %v504
    %v672 = vunpack.c.l.b16 %v505
    %v673 = vunpack.c.h.b16 %v505
    %v674 = vunpack.c.l.b16 %v506
    %v675 = vunpack.c.h.b16 %v506
    %v676 = vunpack.c.l.b16 %v507
    %v677 = vunpack.c.h.b16 %v507
    %v678 = vunpack.c.l.b16 %v508
    %v679 = vunpack.c.h.b16 %v508
    %v680 = vunpack.c.l.b16 %v509
    %v681 = vunpack.c.h.b16 %v509
    %v682 = vunpack.c.l.b16 %v510
    %v683 = vunpack.c.h.b16 %v510
    %v684 = vunpack.c.l.b16 %v511
    %v685 = vunpack.c.h.b16 %v511
    %v686 = vunpack.c.l.b16 %v512
    %v687 = vunpack.c.h.b16 %v512
    %v688 = vunpack.c.l.b16 %v513
    %v689 = vunpack.c.h.b16 %v513
    %v690 = vunpack.c.l.b16 %v514
    %v691 = vunpack.c.h.b16 %v514
    %v692 = vunpack.c.l.b16 %v515
    %v693 = vunpack.c.h.b16 %v515
    %v694 = vunpack.c.l.b16 %v516
    %v695 = vunpack.c.h.b16 %v516
    %v696 = vunpack.c.l.b16 %v517
    %v697 = vunpack.c.h.b16 %v517
    %v698 = vunpack.c.l.b16 %v518
    %v699 = vunpack.c.h.b16 %v518
    %v700 = vunpack.c.l.b16 %v519
    %v701 = vunpack.c.h.b16 %v519
    %v702 = vunpack.c.l.b16 %v520
    %v703 = vunpack.c.h.b16 %v520
    %v704 = vunpack.c.l.b16 %v521
    %v705 = vunpack.c.h.b16 %v521
    %v706 = vunpack.c.l.b16 %v522
    %v707 = vunpack.c.h.b16 %v522
    %v708 = vunpack.c.l.b16 %v523
    %v709 = vunpack.c.h.b16 %v523
    %v710 = vunpack.c.l.b16 %v524
    %v711 = vunpack.c.h.b16 %v524
    %v712 = vunpack.c.l.b16 %v525
    %v713 = vunpack.c.h.b16 %v525
    %v714 = vunpack.c.l.b16 %v526
    %v715 = vunpack.c.h.b16 %v526
    %v716 = vunpack.c.l.b16 %v527
    %v717 = vunpack.c.h.b16 %v527
    %v718 = vunpack.c.l.b16 %v528
    %v719 = vunpack.c.h.b16 %v528
    %v720 = vunpack.c.l.b16 %v529
    %v721 = vunpack.c.h.b16 %v529
    %v722 = vpack.c.b16 %v598, %v594
    %v723 = vpack.c.b16 %v599, %v595
    %v724 = vpack.c.b16 %v600, %v596
    %v725 = vpack.c.b16 %v601, %v597
    %v726 = vpack.c.b16 %v606, %v602
    %v727 = vpack.c.b16 %v607, %v603
    %v728 = vpack.c.b16 %v608, %v604
    %v729 = vpack.c.b16 %v609, %v605
    %v730 = vpack.c.b16 %v614, %v610
    %v731 = vpack.c.b16 %v615, %v611
    %v732 = vpack.c.b16 %v616, %v612
    %v733 = vpack.c.b16 %v617, %v613
    %v734 = vpack.c.b16 %v622, %v618
    %v735 = vpack.c.b16 %v623, %v619
    %v736 = vpack.c.b16 %v624, %v620
    %v737 = vpack.c.b16 %v625, %v621
    %v738 = vpack.c.b16 %v630, %v626
    %v739 = vpack.c.b16 %v631, %v627
    %v740 = vpack.c.b16 %v632, %v628
    %v741 = vpack.c.b16 %v633, %v629
    %v742 = vpack.c.b16 %v638, %v634
    %v743 = vpack.c.b16 %v639, %v635
    %v744 = vpack.c.b16 %v640, %v636
    %v745 = vpack.c.b16 %v641, %v637
    %v746 = vpack.c.b16 %v646, %v642
    %v747 = vpack.c.b16 %v647, %v643
    %v748 = vpack.c.b16 %v648, %v644
    %v749 = vpack.c.b16 %v649, %v645
    %v750 = vpack.c.b16 %v654, %v650
    %v751 = vpack.c.b16 %v655, %v651
    %v752 = vpack.c.b16 %v656, %v652
    %v753 = vpack.c.b16 %v657, %v653
    %v754 = vpack.c.b16 %v662, %v658
    %v755 = vpack.c.b16 %v663, %v659
    %v756 = vpack.c.b16 %v664, %v660
    %v757 = vpack.c.b16 %v665, %v661
    %v758 = vpack.c.b16 %v670, %v666
    %v759 = vpack.c.b16 %v671, %v667
    %v760 = vpack.c.b16 %v672, %v668
    %v761 = vpack.c.b16 %v673, %v669
    %v762 = vpack.c.b16 %v678, %v674
    %v763 = vpack.c.b16 %v679, %v675
    %v764 = vpack.c.b16 %v680, %v676
    %v765 = vpack.c.b16 %v681, %v677
    %v766 = vpack.c.b16 %v686, %v682
    %v767 = vpack.c.b16 %v687, %v683
    %v768 = vpack.c.b16 %v688, %v684
    %v769 = vpack.c.b16 %v689, %v685
    %v770 = vpack.c.b16 %v694, %v690
    %v771 = vpack.c.b16 %v695, %v691
    %v772 = vpack.c.b16 %v696, %v692
    %v773 = vpack.c.b16 %v697, %v693
    %v774 = vpack.c.b16 %v702, %v698
    %v775 = vpack.c.b16 %v703, %v699
    %v776 = vpack.c.b16 %v704, %v700
    %v777 = vpack.c.b16 %v705, %v701
    %v778 = vpack.c.b16 %v710, %v706
    %v779 = vpack.c.b16 %v711, %v707
    %v780 = vpack.c.b16 %v712, %v708
    %v781 = vpack.c.b16 %v713, %v709
    %v782 = vpack.c.b16 %v718, %v714
    %v783 = vpack.c.b16 %v719, %v715
    %v784 = vpack.c.b16 %v720, %v716
    %v785 = vpack.c.b16 %v721, %v717
    %850 = vmatpush.bf16.msra.mxu0 %v750
    %851 = vmatpush.bf16.msra.mxu0 %v746
    %852 = vmatpush.bf16.msra.mxu0 %v742
    %853 = vmatpush.bf16.msra.mxu0 %v738
    %854 = vmatpush.bf16.msra.mxu0 %v734
    %855 = vmatpush.bf16.msra.mxu0 %v730
    %856 = vmatpush.bf16.msra.mxu0 %v726
    %857 = vmatpush.bf16.msra.mxu0 %v722
    %858 = vmatmul.bf16.gmra.mxu0 %v464
    %v859 = vpop.f32.mrf.mxu0
    %v860 = vadd.f32 0.0, %v859
    %v861 = vpop.f32.mrf.mxu0
    %862 = vdwg.mxu0
    %863 = vmatpush.bf16.msra.mxu0 %v782
    %864 = vmatpush.bf16.msra.mxu0 %v778
    %865 = vmatpush.bf16.msra.mxu0 %v774
    %866 = vmatpush.bf16.msra.mxu0 %v770
    %867 = vmatpush.bf16.msra.mxu0 %v766
    %868 = vmatpush.bf16.msra.mxu0 %v762
    %869 = vmatpush.bf16.msra.mxu0 %v758
    %870 = vmatpush.bf16.msra.mxu0 %v754
    %871 = vmatmul.bf16.gmra.mxu0 %v465
    %v872 = vpop.f32.mrf.mxu0
    %v873 = vadd.f32 %v860, %v872
    %v874 = vpop.f32.mrf.mxu0
    %875 = vdwg.mxu0
    %876 = vmatpush.bf16.msra.mxu0 %v751
    %877 = vmatpush.bf16.msra.mxu0 %v747
    %878 = vmatpush.bf16.msra.mxu0 %v743
    %879 = vmatpush.bf16.msra.mxu0 %v739
    %880 = vmatpush.bf16.msra.mxu0 %v735
    %881 = vmatpush.bf16.msra.mxu0 %v731
    %882 = vmatpush.bf16.msra.mxu0 %v727
    %883 = vmatpush.bf16.msra.mxu0 %v723
    %884 = vmatmul.bf16.gmra.mxu0 %v464
    %v885 = vpop.f32.mrf.mxu0
    %v886 = vadd.f32 0.0, %v885
    %v887 = vpop.f32.mrf.mxu0
    %888 = vdwg.mxu0
    %889 = vmatpush.bf16.msra.mxu0 %v783
    %890 = vmatpush.bf16.msra.mxu0 %v779
    %891 = vmatpush.bf16.msra.mxu0 %v775
    %892 = vmatpush.bf16.msra.mxu0 %v771
    %893 = vmatpush.bf16.msra.mxu0 %v767
    %894 = vmatpush.bf16.msra.mxu0 %v763
    %895 = vmatpush.bf16.msra.mxu0 %v759
    %896 = vmatpush.bf16.msra.mxu0 %v755
    %897 = vmatmul.bf16.gmra.mxu0 %v465
    %v898 = vpop.f32.mrf.mxu0
    %v899 = vadd.f32 %v886, %v898
    %v900 = vpop.f32.mrf.mxu0
    %901 = vdwg.mxu0
    %902 = vmatpush.bf16.msra.mxu0 %v752
    %903 = vmatpush.bf16.msra.mxu0 %v748
    %904 = vmatpush.bf16.msra.mxu0 %v744
    %905 = vmatpush.bf16.msra.mxu0 %v740
    %906 = vmatpush.bf16.msra.mxu0 %v736
    %907 = vmatpush.bf16.msra.mxu0 %v732
    %908 = vmatpush.bf16.msra.mxu0 %v728
    %909 = vmatpush.bf16.msra.mxu0 %v724
    %910 = vmatmul.bf16.gmra.mxu0 %v464
    %v911 = vpop.f32.mrf.mxu0
    %v912 = vadd.f32 0.0, %v911
    %v913 = vpop.f32.mrf.mxu0
    %914 = vdwg.mxu0
    %915 = vmatpush.bf16.msra.mxu0 %v784
    %916 = vmatpush.bf16.msra.mxu0 %v780
    %917 = vmatpush.bf16.msra.mxu0 %v776
    %918 = vmatpush.bf16.msra.mxu0 %v772
    %919 = vmatpush.bf16.msra.mxu0 %v768
    %920 = vmatpush.bf16.msra.mxu0 %v764
    %921 = vmatpush.bf16.msra.mxu0 %v760
    %922 = vmatpush.bf16.msra.mxu0 %v756
    %923 = vmatmul.bf16.gmra.mxu0 %v465
    %v924 = vpop.f32.mrf.mxu0
    %v925 = vadd.f32 %v912, %v924
    %v926 = vpop.f32.mrf.mxu0
    %927 = vdwg.mxu0
    %928 = vmatpush.bf16.msra.mxu0 %v753
    %929 = vmatpush.bf16.msra.mxu0 %v749
    %930 = vmatpush.bf16.msra.mxu0 %v745
    %931 = vmatpush.bf16.msra.mxu0 %v741
    %932 = vmatpush.bf16.msra.mxu0 %v737
    %933 = vmatpush.bf16.msra.mxu0 %v733
    %934 = vmatpush.bf16.msra.mxu0 %v729
    %935 = vmatpush.bf16.msra.mxu0 %v725
    %936 = vmatmul.bf16.gmra.mxu0 %v464
    %v937 = vpop.f32.mrf.mxu0
    %v938 = vadd.f32 0.0, %v937
    %v939 = vpop.f32.mrf.mxu0
    %940 = vdwg.mxu0
    %941 = vmatpush.bf16.msra.mxu0 %v785
    %942 = vmatpush.bf16.msra.mxu0 %v781
    %943 = vmatpush.bf16.msra.mxu0 %v777
    %944 = vmatpush.bf16.msra.mxu0 %v773
    %945 = vmatpush.bf16.msra.mxu0 %v769
    %946 = vmatpush.bf16.msra.mxu0 %v765
    %947 = vmatpush.bf16.msra.mxu0 %v761
    %948 = vmatpush.bf16.msra.mxu0 %v757
    %949 = vmatmul.bf16.gmra.mxu0 %v465
    %v950 = vpop.f32.mrf.mxu0
    %v951 = vadd.f32 %v938, %v950
    %v952 = vpop.f32.mrf.mxu0
    %953 = vdwg.mxu0
    %v954 = vpack.c.bf16 %v899, %v873
    %v955 = vpack.c.bf16 %v951, %v925
    %v956 = vld [vmem:[#allocation15] sm:$0xf]
    %958 = vst [vmem:[#allocation1] ss:$9 sm:$0xff] %v956
    %v959 = vld [vmem:[#allocation1] sm:$0xff]
    %v960 = vld [vmem:[#allocation1 + $0x9] sm:$0xff]
    %v961 = vld [vmem:[#allocation1 + $0x12] sm:$0xff]
    %v962 = vld [vmem:[#allocation1 + $0x1b] sm:$0xff]
    %v963 = vpack.i.b16 %v959, %v959
    %v965 = vperm.slane %v963, 0
    %v966 = vpack.i.b16 %v960, %v960
    %v968 = vperm.slane %v966, 0
    %v969 = vpack.i.b16 %v961, %v961
    %v971 = vperm.slane %v969, 0
    %v972 = vpack.i.b16 %v962, %v962
    %v974 = vperm.slane %v972, 0
    %v975 = vunpack.c.l.bf16 %v954
    %v976 = vunpack.c.h.bf16 %v954
    %v977 = vunpack.c.l.bf16 %v955
    %v978 = vunpack.c.h.bf16 %v955
    %v979 = vunpack.c.l.bf16 %v965
    %v980 = vunpack.c.l.bf16 %v968
    %v981 = vunpack.c.l.bf16 %v971
    %v982 = vunpack.c.l.bf16 %v974
    %v983 = vadd.f32 %v975, %v979
    %v984 = vadd.f32 %v976, %v980
    %v985 = vadd.f32 %v977, %v981
    %v986 = vadd.f32 %v978, %v982
    %v987 = vpack.c.bf16 %v984, %v983
    %v988 = vpack.c.bf16 %v986, %v985
    %v989 = vunpack.c.l.bf16 %v987
    %v990 = vunpack.c.h.bf16 %v987
    %v991 = vunpack.c.l.bf16 %v988
    %v992 = vunpack.c.h.bf16 %v988
    %v993 = vmax.f32 %v989, 0.0
    %v994 = vmax.f32 %v990, 0.0
    %v995 = vmax.f32 %v991, 0.0
    %v996 = vmax.f32 %v992, 0.0
    %v997 = vpack.c.bf16 %v994, %v993
    %v998 = vpack.c.bf16 %v996, %v995
    %v999 = vunpack.c.l.bf16 %v997
    %v1000 = vunpack.c.h.bf16 %v997
    %v1001 = vunpack.c.l.bf16 %v998
    %v1002 = vunpack.c.h.bf16 %v998
    %v1003 = vmin.f32 %v999, 6.0
    %v1004 = vmin.f32 %v1000, 6.0
    %v1005 = vmin.f32 %v1001, 6.0
    %v1006 = vmin.f32 %v1002, 6.0
    %v1007 = vpack.c.bf16 %v1003, %v1003
    %v1008 = vpack.c.bf16 %v1004, %v1004
    %v1009 = vpack.c.bf16 %v1005, %v1005
    %v1010 = vpack.c.bf16 %v1006, %v1006
    %v1011 = vld [vmem:[#allocation16] sm:$0xff]
    %v1012 = vld [vmem:[#allocation16 + $0x8] sm:$0xff]
    %v1013 = vld [vmem:[#allocation16 + $0x10] sm:$0xff]
    %v1014 = vld [vmem:[#allocation16 + $0x18] sm:$0xff]
    %v1015 = vld [vmem:[#allocation16 + $0x20] sm:$0xff]
    %v1016 = vld [vmem:[#allocation16 + $0x28] sm:$0xff]
    %v1017 = vld [vmem:[#allocation16 + $0x30] sm:$0xff]
    %v1018 = vld [vmem:[#allocation16 + $0x38] sm:$0xff]
    %v1019 = vld [vmem:[#allocation16 + $0x40] sm:$0xff]
    %v1020 = vld [vmem:[#allocation16 + $0x48] sm:$0xff]
    %v1021 = vld [vmem:[#allocation16 + $0x50] sm:$0xff]
    %v1022 = vld [vmem:[#allocation16 + $0x58] sm:$0xff]
    %v1023 = vld [vmem:[#allocation16 + $0x60] sm:$0xff]
    %v1024 = vld [vmem:[#allocation16 + $0x68] sm:$0xff]
    %v1025 = vld [vmem:[#allocation16 + $0x70] sm:$0xff]
    %v1026 = vld [vmem:[#allocation16 + $0x78] sm:$0xff]
    %v1027 = vld [vmem:[#allocation16 + $0x80] sm:$0xff]
    %v1028 = vld [vmem:[#allocation16 + $0x88] sm:$0xff]
    %v1029 = vld [vmem:[#allocation16 + $0x90] sm:$0xff]
    %v1030 = vld [vmem:[#allocation16 + $0x98] sm:$0xff]
    %v1031 = vld [vmem:[#allocation16 + $0xa0] sm:$0xff]
    %v1032 = vld [vmem:[#allocation16 + $0xa8] sm:$0xff]
    %v1033 = vld [vmem:[#allocation16 + $0xb0] sm:$0xff]
    %v1034 = vld [vmem:[#allocation16 + $0xb8] sm:$0xff]
    %v1035 = vld [vmem:[#allocation16 + $0xc0] sm:$0xff]
    %v1036 = vld [vmem:[#allocation16 + $0xc8] sm:$0xff]
    %v1037 = vld [vmem:[#allocation16 + $0xd0] sm:$0xff]
    %v1038 = vld [vmem:[#allocation16 + $0xd8] sm:$0xff]
    %v1039 = vld [vmem:[#allocation16 + $0xe0] sm:$0xff]
    %v1040 = vld [vmem:[#allocation16 + $0xe8] sm:$0xff]
    %v1041 = vld [vmem:[#allocation16 + $0xf0] sm:$0xff]
    %v1042 = vld [vmem:[#allocation16 + $0xf8] sm:$0xff]
    %v1043 = vld [vmem:[#allocation16 + $0x100] sm:$0xff]
    %v1044 = vld [vmem:[#allocation16 + $0x108] sm:$0xff]
    %v1045 = vld [vmem:[#allocation16 + $0x110] sm:$0xff]
    %v1046 = vld [vmem:[#allocation16 + $0x118] sm:$0xff]
    %v1047 = vld [vmem:[#allocation16 + $0x120] sm:$0xff]
    %v1048 = vld [vmem:[#allocation16 + $0x128] sm:$0xff]
    %v1049 = vld [vmem:[#allocation16 + $0x130] sm:$0xff]
    %v1050 = vld [vmem:[#allocation16 + $0x138] sm:$0xff]
    %v1051 = vld [vmem:[#allocation16 + $0x140] sm:$0xff]
    %v1052 = vld [vmem:[#allocation16 + $0x148] sm:$0xff]
    %v1053 = vld [vmem:[#allocation16 + $0x150] sm:$0xff]
    %v1054 = vld [vmem:[#allocation16 + $0x158] sm:$0xff]
    %v1055 = vld [vmem:[#allocation16 + $0x160] sm:$0xff]
    %v1056 = vld [vmem:[#allocation16 + $0x168] sm:$0xff]
    %v1057 = vld [vmem:[#allocation16 + $0x170] sm:$0xff]
    %v1058 = vld [vmem:[#allocation16 + $0x178] sm:$0xff]
    %v1059 = vld [vmem:[#allocation16 + $0x180] sm:$0xff]
    %v1060 = vld [vmem:[#allocation16 + $0x188] sm:$0xff]
    %v1061 = vld [vmem:[#allocation16 + $0x190] sm:$0xff]
    %v1062 = vld [vmem:[#allocation16 + $0x198] sm:$0xff]
    %v1063 = vld [vmem:[#allocation16 + $0x1a0] sm:$0xff]
    %v1064 = vld [vmem:[#allocation16 + $0x1a8] sm:$0xff]
    %v1065 = vld [vmem:[#allocation16 + $0x1b0] sm:$0xff]
    %v1066 = vld [vmem:[#allocation16 + $0x1b8] sm:$0xff]
    %v1067 = vld [vmem:[#allocation16 + $0x1c0] sm:$0xff]
    %v1068 = vld [vmem:[#allocation16 + $0x1c8] sm:$0xff]
    %v1069 = vld [vmem:[#allocation16 + $0x1d0] sm:$0xff]
    %v1070 = vld [vmem:[#allocation16 + $0x1d8] sm:$0xff]
    %v1071 = vld [vmem:[#allocation16 + $0x1e0] sm:$0xff]
    %v1072 = vld [vmem:[#allocation16 + $0x1e8] sm:$0xff]
    %v1073 = vld [vmem:[#allocation16 + $0x1f0] sm:$0xff]
    %v1074 = vld [vmem:[#allocation16 + $0x1f8] sm:$0xff]
    %v1075 = vld [vmem:[#allocation16 + $0x200] sm:$0xff]
    %v1076 = vld [vmem:[#allocation16 + $0x208] sm:$0xff]
    %v1077 = vld [vmem:[#allocation16 + $0x210] sm:$0xff]
    %v1078 = vld [vmem:[#allocation16 + $0x218] sm:$0xff]
    %v1079 = vld [vmem:[#allocation16 + $0x220] sm:$0xff]
    %v1080 = vld [vmem:[#allocation16 + $0x228] sm:$0xff]
    %v1081 = vld [vmem:[#allocation16 + $0x230] sm:$0xff]
    %v1082 = vld [vmem:[#allocation16 + $0x238] sm:$0xff]
    %v1083 = vld [vmem:[#allocation16 + $0x240] sm:$0xff]
    %v1084 = vld [vmem:[#allocation16 + $0x248] sm:$0xff]
    %v1085 = vld [vmem:[#allocation16 + $0x250] sm:$0xff]
    %v1086 = vld [vmem:[#allocation16 + $0x258] sm:$0xff]
    %v1087 = vld [vmem:[#allocation16 + $0x260] sm:$0xff]
    %v1088 = vld [vmem:[#allocation16 + $0x268] sm:$0xff]
    %v1089 = vld [vmem:[#allocation16 + $0x270] sm:$0xff]
    %v1090 = vld [vmem:[#allocation16 + $0x278] sm:$0xff]
    %v1091 = vld [vmem:[#allocation16 + $0x280] sm:$0xff]
    %v1092 = vld [vmem:[#allocation16 + $0x288] sm:$0xff]
    %v1093 = vld [vmem:[#allocation16 + $0x290] sm:$0xff]
    %v1094 = vld [vmem:[#allocation16 + $0x298] sm:$0xff]
    %v1095 = vld [vmem:[#allocation16 + $0x2a0] sm:$0xff]
    %v1096 = vld [vmem:[#allocation16 + $0x2a8] sm:$0xff]
    %v1097 = vld [vmem:[#allocation16 + $0x2b0] sm:$0xff]
    %v1098 = vld [vmem:[#allocation16 + $0x2b8] sm:$0xff]
    %v1099 = vld [vmem:[#allocation16 + $0x2c0] sm:$0xff]
    %v1100 = vld [vmem:[#allocation16 + $0x2c8] sm:$0xff]
    %v1101 = vld [vmem:[#allocation16 + $0x2d0] sm:$0xff]
    %v1102 = vld [vmem:[#allocation16 + $0x2d8] sm:$0xff]
    %v1103 = vld [vmem:[#allocation16 + $0x2e0] sm:$0xff]
    %v1104 = vld [vmem:[#allocation16 + $0x2e8] sm:$0xff]
    %v1105 = vld [vmem:[#allocation16 + $0x2f0] sm:$0xff]
    %v1106 = vld [vmem:[#allocation16 + $0x2f8] sm:$0xff]
    %v1107 = vld [vmem:[#allocation16 + $0x300] sm:$0xff]
    %v1108 = vld [vmem:[#allocation16 + $0x308] sm:$0xff]
    %v1109 = vld [vmem:[#allocation16 + $0x310] sm:$0xff]
    %v1110 = vld [vmem:[#allocation16 + $0x318] sm:$0xff]
    %v1111 = vld [vmem:[#allocation16 + $0x320] sm:$0xff]
    %v1112 = vld [vmem:[#allocation16 + $0x328] sm:$0xff]
    %v1113 = vld [vmem:[#allocation16 + $0x330] sm:$0xff]
    %v1114 = vld [vmem:[#allocation16 + $0x338] sm:$0xff]
    %v1115 = vld [vmem:[#allocation16 + $0x340] sm:$0xff]
    %v1116 = vld [vmem:[#allocation16 + $0x348] sm:$0xff]
    %v1117 = vld [vmem:[#allocation16 + $0x350] sm:$0xff]
    %v1118 = vld [vmem:[#allocation16 + $0x358] sm:$0xff]
    %v1119 = vld [vmem:[#allocation16 + $0x360] sm:$0xff]
    %v1120 = vld [vmem:[#allocation16 + $0x368] sm:$0xff]
    %v1121 = vld [vmem:[#allocation16 + $0x370] sm:$0xff]
    %v1122 = vld [vmem:[#allocation16 + $0x378] sm:$0xff]
    %v1123 = vld [vmem:[#allocation16 + $0x380] sm:$0xff]
    %v1124 = vld [vmem:[#allocation16 + $0x388] sm:$0xff]
    %v1125 = vld [vmem:[#allocation16 + $0x390] sm:$0xff]
    %v1126 = vld [vmem:[#allocation16 + $0x398] sm:$0xff]
    %v1127 = vld [vmem:[#allocation16 + $0x3a0] sm:$0xff]
    %v1128 = vld [vmem:[#allocation16 + $0x3a8] sm:$0xff]
    %v1129 = vld [vmem:[#allocation16 + $0x3b0] sm:$0xff]
    %v1130 = vld [vmem:[#allocation16 + $0x3b8] sm:$0xff]
    %v1131 = vld [vmem:[#allocation16 + $0x3c0] sm:$0xff]
    %v1132 = vld [vmem:[#allocation16 + $0x3c8] sm:$0xff]
    %v1133 = vld [vmem:[#allocation16 + $0x3d0] sm:$0xff]
    %v1134 = vld [vmem:[#allocation16 + $0x3d8] sm:$0xff]
    %v1135 = vld [vmem:[#allocation16 + $0x3e0] sm:$0xff]
    %v1136 = vld [vmem:[#allocation16 + $0x3e8] sm:$0xff]
    %v1137 = vld [vmem:[#allocation16 + $0x3f0] sm:$0xff]
    %v1138 = vld [vmem:[#allocation16 + $0x3f8] sm:$0xff]
    %v1267 = vunpack.c.l.b16 %v1011
    %v1268 = vunpack.c.h.b16 %v1011
    %v1269 = vunpack.c.l.b16 %v1012
    %v1270 = vunpack.c.h.b16 %v1012
    %v1271 = vunpack.c.l.b16 %v1013
    %v1272 = vunpack.c.h.b16 %v1013
    %v1273 = vunpack.c.l.b16 %v1014
    %v1274 = vunpack.c.h.b16 %v1014
    %v1275 = vunpack.c.l.b16 %v1015
    %v1276 = vunpack.c.h.b16 %v1015
    %v1277 = vunpack.c.l.b16 %v1016
    %v1278 = vunpack.c.h.b16 %v1016
    %v1279 = vunpack.c.l.b16 %v1017
    %v1280 = vunpack.c.h.b16 %v1017
    %v1281 = vunpack.c.l.b16 %v1018
    %v1282 = vunpack.c.h.b16 %v1018
    %v1283 = vunpack.c.l.b16 %v1019
    %v1284 = vunpack.c.h.b16 %v1019
    %v1285 = vunpack.c.l.b16 %v1020
    %v1286 = vunpack.c.h.b16 %v1020
    %v1287 = vunpack.c.l.b16 %v1021
    %v1288 = vunpack.c.h.b16 %v1021
    %v1289 = vunpack.c.l.b16 %v1022
    %v1290 = vunpack.c.h.b16 %v1022
    %v1291 = vunpack.c.l.b16 %v1023
    %v1292 = vunpack.c.h.b16 %v1023
    %v1293 = vunpack.c.l.b16 %v1024
    %v1294 = vunpack.c.h.b16 %v1024
    %v1295 = vunpack.c.l.b16 %v1025
    %v1296 = vunpack.c.h.b16 %v1025
    %v1297 = vunpack.c.l.b16 %v1026
    %v1298 = vunpack.c.h.b16 %v1026
    %v1299 = vunpack.c.l.b16 %v1027
    %v1300 = vunpack.c.h.b16 %v1027
    %v1301 = vunpack.c.l.b16 %v1028
    %v1302 = vunpack.c.h.b16 %v1028
    %v1303 = vunpack.c.l.b16 %v1029
    %v1304 = vunpack.c.h.b16 %v1029
    %v1305 = vunpack.c.l.b16 %v1030
    %v1306 = vunpack.c.h.b16 %v1030
    %v1307 = vunpack.c.l.b16 %v1031
    %v1308 = vunpack.c.h.b16 %v1031
    %v1309 = vunpack.c.l.b16 %v1032
    %v1310 = vunpack.c.h.b16 %v1032
    %v1311 = vunpack.c.l.b16 %v1033
    %v1312 = vunpack.c.h.b16 %v1033
    %v1313 = vunpack.c.l.b16 %v1034
    %v1314 = vunpack.c.h.b16 %v1034
    %v1315 = vunpack.c.l.b16 %v1035
    %v1316 = vunpack.c.h.b16 %v1035
    %v1317 = vunpack.c.l.b16 %v1036
    %v1318 = vunpack.c.h.b16 %v1036
    %v1319 = vunpack.c.l.b16 %v1037
    %v1320 = vunpack.c.h.b16 %v1037
    %v1321 = vunpack.c.l.b16 %v1038
    %v1322 = vunpack.c.h.b16 %v1038
    %v1323 = vunpack.c.l.b16 %v1039
    %v1324 = vunpack.c.h.b16 %v1039
    %v1325 = vunpack.c.l.b16 %v1040
    %v1326 = vunpack.c.h.b16 %v1040
    %v1327 = vunpack.c.l.b16 %v1041
    %v1328 = vunpack.c.h.b16 %v1041
    %v1329 = vunpack.c.l.b16 %v1042
    %v1330 = vunpack.c.h.b16 %v1042
    %v1331 = vunpack.c.l.b16 %v1043
    %v1332 = vunpack.c.h.b16 %v1043
    %v1333 = vunpack.c.l.b16 %v1044
    %v1334 = vunpack.c.h.b16 %v1044
    %v1335 = vunpack.c.l.b16 %v1045
    %v1336 = vunpack.c.h.b16 %v1045
    %v1337 = vunpack.c.l.b16 %v1046
    %v1338 = vunpack.c.h.b16 %v1046
    %v1339 = vunpack.c.l.b16 %v1047
    %v1340 = vunpack.c.h.b16 %v1047
    %v1341 = vunpack.c.l.b16 %v1048
    %v1342 = vunpack.c.h.b16 %v1048
    %v1343 = vunpack.c.l.b16 %v1049
    %v1344 = vunpack.c.h.b16 %v1049
    %v1345 = vunpack.c.l.b16 %v1050
    %v1346 = vunpack.c.h.b16 %v1050
    %v1347 = vunpack.c.l.b16 %v1051
    %v1348 = vunpack.c.h.b16 %v1051
    %v1349 = vunpack.c.l.b16 %v1052
    %v1350 = vunpack.c.h.b16 %v1052
    %v1351 = vunpack.c.l.b16 %v1053
    %v1352 = vunpack.c.h.b16 %v1053
    %v1353 = vunpack.c.l.b16 %v1054
    %v1354 = vunpack.c.h.b16 %v1054
    %v1355 = vunpack.c.l.b16 %v1055
    %v1356 = vunpack.c.h.b16 %v1055
    %v1357 = vunpack.c.l.b16 %v1056
    %v1358 = vunpack.c.h.b16 %v1056
    %v1359 = vunpack.c.l.b16 %v1057
    %v1360 = vunpack.c.h.b16 %v1057
    %v1361 = vunpack.c.l.b16 %v1058
    %v1362 = vunpack.c.h.b16 %v1058
    %v1363 = vunpack.c.l.b16 %v1059
    %v1364 = vunpack.c.h.b16 %v1059
    %v1365 = vunpack.c.l.b16 %v1060
    %v1366 = vunpack.c.h.b16 %v1060
    %v1367 = vunpack.c.l.b16 %v1061
    %v1368 = vunpack.c.h.b16 %v1061
    %v1369 = vunpack.c.l.b16 %v1062
    %v1370 = vunpack.c.h.b16 %v1062
    %v1371 = vunpack.c.l.b16 %v1063
    %v1372 = vunpack.c.h.b16 %v1063
    %v1373 = vunpack.c.l.b16 %v1064
    %v1374 = vunpack.c.h.b16 %v1064
    %v1375 = vunpack.c.l.b16 %v1065
    %v1376 = vunpack.c.h.b16 %v1065
    %v1377 = vunpack.c.l.b16 %v1066
    %v1378 = vunpack.c.h.b16 %v1066
    %v1379 = vunpack.c.l.b16 %v1067
    %v1380 = vunpack.c.h.b16 %v1067
    %v1381 = vunpack.c.l.b16 %v1068
    %v1382 = vunpack.c.h.b16 %v1068
    %v1383 = vunpack.c.l.b16 %v1069
    %v1384 = vunpack.c.h.b16 %v1069
    %v1385 = vunpack.c.l.b16 %v1070
    %v1386 = vunpack.c.h.b16 %v1070
    %v1387 = vunpack.c.l.b16 %v1071
    %v1388 = vunpack.c.h.b16 %v1071
    %v1389 = vunpack.c.l.b16 %v1072
    %v1390 = vunpack.c.h.b16 %v1072
    %v1391 = vunpack.c.l.b16 %v1073
    %v1392 = vunpack.c.h.b16 %v1073
    %v1393 = vunpack.c.l.b16 %v1074
    %v1394 = vunpack.c.h.b16 %v1074
    %v1395 = vunpack.c.l.b16 %v1075
    %v1396 = vunpack.c.h.b16 %v1075
    %v1397 = vunpack.c.l.b16 %v1076
    %v1398 = vunpack.c.h.b16 %v1076
    %v1399 = vunpack.c.l.b16 %v1077
    %v1400 = vunpack.c.h.b16 %v1077
    %v1401 = vunpack.c.l.b16 %v1078
    %v1402 = vunpack.c.h.b16 %v1078
    %v1403 = vunpack.c.l.b16 %v1079
    %v1404 = vunpack.c.h.b16 %v1079
    %v1405 = vunpack.c.l.b16 %v1080
    %v1406 = vunpack.c.h.b16 %v1080
    %v1407 = vunpack.c.l.b16 %v1081
    %v1408 = vunpack.c.h.b16 %v1081
    %v1409 = vunpack.c.l.b16 %v1082
    %v1410 = vunpack.c.h.b16 %v1082
    %v1411 = vunpack.c.l.b16 %v1083
    %v1412 = vunpack.c.h.b16 %v1083
    %v1413 = vunpack.c.l.b16 %v1084
    %v1414 = vunpack.c.h.b16 %v1084
    %v1415 = vunpack.c.l.b16 %v1085
    %v1416 = vunpack.c.h.b16 %v1085
    %v1417 = vunpack.c.l.b16 %v1086
    %v1418 = vunpack.c.h.b16 %v1086
    %v1419 = vunpack.c.l.b16 %v1087
    %v1420 = vunpack.c.h.b16 %v1087
    %v1421 = vunpack.c.l.b16 %v1088
    %v1422 = vunpack.c.h.b16 %v1088
    %v1423 = vunpack.c.l.b16 %v1089
    %v1424 = vunpack.c.h.b16 %v1089
    %v1425 = vunpack.c.l.b16 %v1090
    %v1426 = vunpack.c.h.b16 %v1090
    %v1427 = vunpack.c.l.b16 %v1091
    %v1428 = vunpack.c.h.b16 %v1091
    %v1429 = vunpack.c.l.b16 %v1092
    %v1430 = vunpack.c.h.b16 %v1092
    %v1431 = vunpack.c.l.b16 %v1093
    %v1432 = vunpack.c.h.b16 %v1093
    %v1433 = vunpack.c.l.b16 %v1094
    %v1434 = vunpack.c.h.b16 %v1094
    %v1435 = vunpack.c.l.b16 %v1095
    %v1436 = vunpack.c.h.b16 %v1095
    %v1437 = vunpack.c.l.b16 %v1096
    %v1438 = vunpack.c.h.b16 %v1096
    %v1439 = vunpack.c.l.b16 %v1097
    %v1440 = vunpack.c.h.b16 %v1097
    %v1441 = vunpack.c.l.b16 %v1098
    %v1442 = vunpack.c.h.b16 %v1098
    %v1443 = vunpack.c.l.b16 %v1099
    %v1444 = vunpack.c.h.b16 %v1099
    %v1445 = vunpack.c.l.b16 %v1100
    %v1446 = vunpack.c.h.b16 %v1100
    %v1447 = vunpack.c.l.b16 %v1101
    %v1448 = vunpack.c.h.b16 %v1101
    %v1449 = vunpack.c.l.b16 %v1102
    %v1450 = vunpack.c.h.b16 %v1102
    %v1451 = vunpack.c.l.b16 %v1103
    %v1452 = vunpack.c.h.b16 %v1103
    %v1453 = vunpack.c.l.b16 %v1104
    %v1454 = vunpack.c.h.b16 %v1104
    %v1455 = vunpack.c.l.b16 %v1105
    %v1456 = vunpack.c.h.b16 %v1105
    %v1457 = vunpack.c.l.b16 %v1106
    %v1458 = vunpack.c.h.b16 %v1106
    %v1459 = vunpack.c.l.b16 %v1107
    %v1460 = vunpack.c.h.b16 %v1107
    %v1461 = vunpack.c.l.b16 %v1108
    %v1462 = vunpack.c.h.b16 %v1108
    %v1463 = vunpack.c.l.b16 %v1109
    %v1464 = vunpack.c.h.b16 %v1109
    %v1465 = vunpack.c.l.b16 %v1110
    %v1466 = vunpack.c.h.b16 %v1110
    %v1467 = vunpack.c.l.b16 %v1111
    %v1468 = vunpack.c.h.b16 %v1111
    %v1469 = vunpack.c.l.b16 %v1112
    %v1470 = vunpack.c.h.b16 %v1112
    %v1471 = vunpack.c.l.b16 %v1113
    %v1472 = vunpack.c.h.b16 %v1113
    %v1473 = vunpack.c.l.b16 %v1114
    %v1474 = vunpack.c.h.b16 %v1114
    %v1475 = vunpack.c.l.b16 %v1115
    %v1476 = vunpack.c.h.b16 %v1115
    %v1477 = vunpack.c.l.b16 %v1116
    %v1478 = vunpack.c.h.b16 %v1116
    %v1479 = vunpack.c.l.b16 %v1117
    %v1480 = vunpack.c.h.b16 %v1117
    %v1481 = vunpack.c.l.b16 %v1118
    %v1482 = vunpack.c.h.b16 %v1118
    %v1483 = vunpack.c.l.b16 %v1119
    %v1484 = vunpack.c.h.b16 %v1119
    %v1485 = vunpack.c.l.b16 %v1120
    %v1486 = vunpack.c.h.b16 %v1120
    %v1487 = vunpack.c.l.b16 %v1121
    %v1488 = vunpack.c.h.b16 %v1121
    %v1489 = vunpack.c.l.b16 %v1122
    %v1490 = vunpack.c.h.b16 %v1122
    %v1491 = vunpack.c.l.b16 %v1123
    %v1492 = vunpack.c.h.b16 %v1123
    %v1493 = vunpack.c.l.b16 %v1124
    %v1494 = vunpack.c.h.b16 %v1124
    %v1495 = vunpack.c.l.b16 %v1125
    %v1496 = vunpack.c.h.b16 %v1125
    %v1497 = vunpack.c.l.b16 %v1126
    %v1498 = vunpack.c.h.b16 %v1126
    %v1499 = vunpack.c.l.b16 %v1127
    %v1500 = vunpack.c.h.b16 %v1127
    %v1501 = vunpack.c.l.b16 %v1128
    %v1502 = vunpack.c.h.b16 %v1128
    %v1503 = vunpack.c.l.b16 %v1129
    %v1504 = vunpack.c.h.b16 %v1129
    %v1505 = vunpack.c.l.b16 %v1130
    %v1506 = vunpack.c.h.b16 %v1130
    %v1507 = vunpack.c.l.b16 %v1131
    %v1508 = vunpack.c.h.b16 %v1131
    %v1509 = vunpack.c.l.b16 %v1132
    %v1510 = vunpack.c.h.b16 %v1132
    %v1511 = vunpack.c.l.b16 %v1133
    %v1512 = vunpack.c.h.b16 %v1133
    %v1513 = vunpack.c.l.b16 %v1134
    %v1514 = vunpack.c.h.b16 %v1134
    %v1515 = vunpack.c.l.b16 %v1135
    %v1516 = vunpack.c.h.b16 %v1135
    %v1517 = vunpack.c.l.b16 %v1136
    %v1518 = vunpack.c.h.b16 %v1136
    %v1519 = vunpack.c.l.b16 %v1137
    %v1520 = vunpack.c.h.b16 %v1137
    %v1521 = vunpack.c.l.b16 %v1138
    %v1522 = vunpack.c.h.b16 %v1138
    %v1523 = vpack.c.b16 %v1271, %v1267
    %v1524 = vpack.c.b16 %v1272, %v1268
    %v1525 = vpack.c.b16 %v1273, %v1269
    %v1526 = vpack.c.b16 %v1274, %v1270
    %v1527 = vpack.c.b16 %v1279, %v1275
    %v1528 = vpack.c.b16 %v1280, %v1276
    %v1529 = vpack.c.b16 %v1281, %v1277
    %v1530 = vpack.c.b16 %v1282, %v1278
    %v1531 = vpack.c.b16 %v1287, %v1283
    %v1532 = vpack.c.b16 %v1288, %v1284
    %v1533 = vpack.c.b16 %v1289, %v1285
    %v1534 = vpack.c.b16 %v1290, %v1286
    %v1535 = vpack.c.b16 %v1295, %v1291
    %v1536 = vpack.c.b16 %v1296, %v1292
    %v1537 = vpack.c.b16 %v1297, %v1293
    %v1538 = vpack.c.b16 %v1298, %v1294
    %v1539 = vpack.c.b16 %v1303, %v1299
    %v1540 = vpack.c.b16 %v1304, %v1300
    %v1541 = vpack.c.b16 %v1305, %v1301
    %v1542 = vpack.c.b16 %v1306, %v1302
    %v1543 = vpack.c.b16 %v1311, %v1307
    %v1544 = vpack.c.b16 %v1312, %v1308
    %v1545 = vpack.c.b16 %v1313, %v1309
    %v1546 = vpack.c.b16 %v1314, %v1310
    %v1547 = vpack.c.b16 %v1319, %v1315
    %v1548 = vpack.c.b16 %v1320, %v1316
    %v1549 = vpack.c.b16 %v1321, %v1317
    %v1550 = vpack.c.b16 %v1322, %v1318
    %v1551 = vpack.c.b16 %v1327, %v1323
    %v1552 = vpack.c.b16 %v1328, %v1324
    %v1553 = vpack.c.b16 %v1329, %v1325
    %v1554 = vpack.c.b16 %v1330, %v1326
    %v1555 = vpack.c.b16 %v1335, %v1331
    %v1556 = vpack.c.b16 %v1336, %v1332
    %v1557 = vpack.c.b16 %v1337, %v1333
    %v1558 = vpack.c.b16 %v1338, %v1334
    %v1559 = vpack.c.b16 %v1343, %v1339
    %v1560 = vpack.c.b16 %v1344, %v1340
    %v1561 = vpack.c.b16 %v1345, %v1341
    %v1562 = vpack.c.b16 %v1346, %v1342
    %v1563 = vpack.c.b16 %v1351, %v1347
    %v1564 = vpack.c.b16 %v1352, %v1348
    %v1565 = vpack.c.b16 %v1353, %v1349
    %v1566 = vpack.c.b16 %v1354, %v1350
    %v1567 = vpack.c.b16 %v1359, %v1355
    %v1568 = vpack.c.b16 %v1360, %v1356
    %v1569 = vpack.c.b16 %v1361, %v1357
    %v1570 = vpack.c.b16 %v1362, %v1358
    %v1571 = vpack.c.b16 %v1367, %v1363
    %v1572 = vpack.c.b16 %v1368, %v1364
    %v1573 = vpack.c.b16 %v1369, %v1365
    %v1574 = vpack.c.b16 %v1370, %v1366
    %v1575 = vpack.c.b16 %v1375, %v1371
    %v1576 = vpack.c.b16 %v1376, %v1372
    %v1577 = vpack.c.b16 %v1377, %v1373
    %v1578 = vpack.c.b16 %v1378, %v1374
    %v1579 = vpack.c.b16 %v1383, %v1379
    %v1580 = vpack.c.b16 %v1384, %v1380
    %v1581 = vpack.c.b16 %v1385, %v1381
    %v1582 = vpack.c.b16 %v1386, %v1382
    %v1583 = vpack.c.b16 %v1391, %v1387
    %v1584 = vpack.c.b16 %v1392, %v1388
    %v1585 = vpack.c.b16 %v1393, %v1389
    %v1586 = vpack.c.b16 %v1394, %v1390
    %v1587 = vpack.c.b16 %v1399, %v1395
    %v1588 = vpack.c.b16 %v1400, %v1396
    %v1589 = vpack.c.b16 %v1401, %v1397
    %v1590 = vpack.c.b16 %v1402, %v1398
    %v1591 = vpack.c.b16 %v1407, %v1403
    %v1592 = vpack.c.b16 %v1408, %v1404
    %v1593 = vpack.c.b16 %v1409, %v1405
    %v1594 = vpack.c.b16 %v1410, %v1406
    %v1595 = vpack.c.b16 %v1415, %v1411
    %v1596 = vpack.c.b16 %v1416, %v1412
    %v1597 = vpack.c.b16 %v1417, %v1413
    %v1598 = vpack.c.b16 %v1418, %v1414
    %v1599 = vpack.c.b16 %v1423, %v1419
    %v1600 = vpack.c.b16 %v1424, %v1420
    %v1601 = vpack.c.b16 %v1425, %v1421
    %v1602 = vpack.c.b16 %v1426, %v1422
    %v1603 = vpack.c.b16 %v1431, %v1427
    %v1604 = vpack.c.b16 %v1432, %v1428
    %v1605 = vpack.c.b16 %v1433, %v1429
    %v1606 = vpack.c.b16 %v1434, %v1430
    %v1607 = vpack.c.b16 %v1439, %v1435
    %v1608 = vpack.c.b16 %v1440, %v1436
    %v1609 = vpack.c.b16 %v1441, %v1437
    %v1610 = vpack.c.b16 %v1442, %v1438
    %v1611 = vpack.c.b16 %v1447, %v1443
    %v1612 = vpack.c.b16 %v1448, %v1444
    %v1613 = vpack.c.b16 %v1449, %v1445
    %v1614 = vpack.c.b16 %v1450, %v1446
    %v1615 = vpack.c.b16 %v1455, %v1451
    %v1616 = vpack.c.b16 %v1456, %v1452
    %v1617 = vpack.c.b16 %v1457, %v1453
    %v1618 = vpack.c.b16 %v1458, %v1454
    %v1619 = vpack.c.b16 %v1463, %v1459
    %v1620 = vpack.c.b16 %v1464, %v1460
    %v1621 = vpack.c.b16 %v1465, %v1461
    %v1622 = vpack.c.b16 %v1466, %v1462
    %v1623 = vpack.c.b16 %v1471, %v1467
    %v1624 = vpack.c.b16 %v1472, %v1468
    %v1625 = vpack.c.b16 %v1473, %v1469
    %v1626 = vpack.c.b16 %v1474, %v1470
    %v1627 = vpack.c.b16 %v1479, %v1475
    %v1628 = vpack.c.b16 %v1480, %v1476
    %v1629 = vpack.c.b16 %v1481, %v1477
    %v1630 = vpack.c.b16 %v1482, %v1478
    %v1631 = vpack.c.b16 %v1487, %v1483
    %v1632 = vpack.c.b16 %v1488, %v1484
    %v1633 = vpack.c.b16 %v1489, %v1485
    %v1634 = vpack.c.b16 %v1490, %v1486
    %v1635 = vpack.c.b16 %v1495, %v1491
    %v1636 = vpack.c.b16 %v1496, %v1492
    %v1637 = vpack.c.b16 %v1497, %v1493
    %v1638 = vpack.c.b16 %v1498, %v1494
    %v1639 = vpack.c.b16 %v1503, %v1499
    %v1640 = vpack.c.b16 %v1504, %v1500
    %v1641 = vpack.c.b16 %v1505, %v1501
    %v1642 = vpack.c.b16 %v1506, %v1502
    %v1643 = vpack.c.b16 %v1511, %v1507
    %v1644 = vpack.c.b16 %v1512, %v1508
    %v1645 = vpack.c.b16 %v1513, %v1509
    %v1646 = vpack.c.b16 %v1514, %v1510
    %v1647 = vpack.c.b16 %v1519, %v1515
    %v1648 = vpack.c.b16 %v1520, %v1516
    %v1649 = vpack.c.b16 %v1521, %v1517
    %v1650 = vpack.c.b16 %v1522, %v1518
    %1779 = vmatpush.bf16.msra.mxu0 %v1551
    %1780 = vmatpush.bf16.msra.mxu0 %v1547
    %1781 = vmatpush.bf16.msra.mxu0 %v1543
    %1782 = vmatpush.bf16.msra.mxu0 %v1539
    %1783 = vmatpush.bf16.msra.mxu0 %v1535
    %1784 = vmatpush.bf16.msra.mxu0 %v1531
    %1785 = vmatpush.bf16.msra.mxu0 %v1527
    %1786 = vmatpush.bf16.msra.mxu0 %v1523
    %1787 = vmatmul.bf16.gmra.mxu0 %v1007
    %v1788 = vpop.f32.mrf.mxu0
    %v1789 = vadd.f32 0.0, %v1788
    %v1790 = vpop.f32.mrf.mxu0
    %1791 = vdwg.mxu0
    %1792 = vmatpush.bf16.msra.mxu0 %v1583
    %1793 = vmatpush.bf16.msra.mxu0 %v1579
    %1794 = vmatpush.bf16.msra.mxu0 %v1575
    %1795 = vmatpush.bf16.msra.mxu0 %v1571
    %1796 = vmatpush.bf16.msra.mxu0 %v1567
    %1797 = vmatpush.bf16.msra.mxu0 %v1563
    %1798 = vmatpush.bf16.msra.mxu0 %v1559
    %1799 = vmatpush.bf16.msra.mxu0 %v1555
    %1800 = vmatmul.bf16.gmra.mxu0 %v1008
    %v1801 = vpop.f32.mrf.mxu0
    %v1802 = vadd.f32 %v1789, %v1801
    %v1803 = vpop.f32.mrf.mxu0
    %1804 = vdwg.mxu0
    %1805 = vmatpush.bf16.msra.mxu0 %v1615
    %1806 = vmatpush.bf16.msra.mxu0 %v1611
    %1807 = vmatpush.bf16.msra.mxu0 %v1607
    %1808 = vmatpush.bf16.msra.mxu0 %v1603
    %1809 = vmatpush.bf16.msra.mxu0 %v1599
    %1810 = vmatpush.bf16.msra.mxu0 %v1595
    %1811 = vmatpush.bf16.msra.mxu0 %v1591
    %1812 = vmatpush.bf16.msra.mxu0 %v1587
    %1813 = vmatmul.bf16.gmra.mxu0 %v1009
    %v1814 = vpop.f32.mrf.mxu0
    %v1815 = vadd.f32 %v1802, %v1814
    %v1816 = vpop.f32.mrf.mxu0
    %1817 = vdwg.mxu0
    %1818 = vmatpush.bf16.msra.mxu0 %v1647
    %1819 = vmatpush.bf16.msra.mxu0 %v1643
    %1820 = vmatpush.bf16.msra.mxu0 %v1639
    %1821 = vmatpush.bf16.msra.mxu0 %v1635
    %1822 = vmatpush.bf16.msra.mxu0 %v1631
    %1823 = vmatpush.bf16.msra.mxu0 %v1627
    %1824 = vmatpush.bf16.msra.mxu0 %v1623
    %1825 = vmatpush.bf16.msra.mxu0 %v1619
    %1826 = vmatmul.bf16.gmra.mxu0 %v1010
    %v1827 = vpop.f32.mrf.mxu0
    %v1828 = vadd.f32 %v1815, %v1827
    %v1829 = vpop.f32.mrf.mxu0
    %1830 = vdwg.mxu0
    %1831 = vmatpush.bf16.msra.mxu0 %v1552
    %1832 = vmatpush.bf16.msra.mxu0 %v1548
    %1833 = vmatpush.bf16.msra.mxu0 %v1544
    %1834 = vmatpush.bf16.msra.mxu0 %v1540
    %1835 = vmatpush.bf16.msra.mxu0 %v1536
    %1836 = vmatpush.bf16.msra.mxu0 %v1532
    %1837 = vmatpush.bf16.msra.mxu0 %v1528
    %1838 = vmatpush.bf16.msra.mxu0 %v1524
    %1839 = vmatmul.bf16.gmra.mxu0 %v1007
    %v1840 = vpop.f32.mrf.mxu0
    %v1841 = vadd.f32 0.0, %v1840
    %v1842 = vpop.f32.mrf.mxu0
    %1843 = vdwg.mxu0
    %1844 = vmatpush.bf16.msra.mxu0 %v1584
    %1845 = vmatpush.bf16.msra.mxu0 %v1580
    %1846 = vmatpush.bf16.msra.mxu0 %v1576
    %1847 = vmatpush.bf16.msra.mxu0 %v1572
    %1848 = vmatpush.bf16.msra.mxu0 %v1568
    %1849 = vmatpush.bf16.msra.mxu0 %v1564
    %1850 = vmatpush.bf16.msra.mxu0 %v1560
    %1851 = vmatpush.bf16.msra.mxu0 %v1556
    %1852 = vmatmul.bf16.gmra.mxu0 %v1008
    %v1853 = vpop.f32.mrf.mxu0
    %v1854 = vadd.f32 %v1841, %v1853
    %v1855 = vpop.f32.mrf.mxu0
    %1856 = vdwg.mxu0
    %1857 = vmatpush.bf16.msra.mxu0 %v1616
    %1858 = vmatpush.bf16.msra.mxu0 %v1612
    %1859 = vmatpush.bf16.msra.mxu0 %v1608
    %1860 = vmatpush.bf16.msra.mxu0 %v1604
    %1861 = vmatpush.bf16.msra.mxu0 %v1600
    %1862 = vmatpush.bf16.msra.mxu0 %v1596
    %1863 = vmatpush.bf16.msra.mxu0 %v1592
    %1864 = vmatpush.bf16.msra.mxu0 %v1588
    %1865 = vmatmul.bf16.gmra.mxu0 %v1009
    %v1866 = vpop.f32.mrf.mxu0
    %v1867 = vadd.f32 %v1854, %v1866
    %v1868 = vpop.f32.mrf.mxu0
    %1869 = vdwg.mxu0
    %1870 = vmatpush.bf16.msra.mxu0 %v1648
    %1871 = vmatpush.bf16.msra.mxu0 %v1644
    %1872 = vmatpush.bf16.msra.mxu0 %v1640
    %1873 = vmatpush.bf16.msra.mxu0 %v1636
    %1874 = vmatpush.bf16.msra.mxu0 %v1632
    %1875 = vmatpush.bf16.msra.mxu0 %v1628
    %1876 = vmatpush.bf16.msra.mxu0 %v1624
    %1877 = vmatpush.bf16.msra.mxu0 %v1620
    %1878 = vmatmul.bf16.gmra.mxu0 %v1010
    %v1879 = vpop.f32.mrf.mxu0
    %v1880 = vadd.f32 %v1867, %v1879
    %v1881 = vpop.f32.mrf.mxu0
    %1882 = vdwg.mxu0
    %1883 = vmatpush.bf16.msra.mxu0 %v1553
    %1884 = vmatpush.bf16.msra.mxu0 %v1549
    %1885 = vmatpush.bf16.msra.mxu0 %v1545
    %1886 = vmatpush.bf16.msra.mxu0 %v1541
    %1887 = vmatpush.bf16.msra.mxu0 %v1537
    %1888 = vmatpush.bf16.msra.mxu0 %v1533
    %1889 = vmatpush.bf16.msra.mxu0 %v1529
    %1890 = vmatpush.bf16.msra.mxu0 %v1525
    %1891 = vmatmul.bf16.gmra.mxu0 %v1007
    %v1892 = vpop.f32.mrf.mxu0
    %v1893 = vadd.f32 0.0, %v1892
    %v1894 = vpop.f32.mrf.mxu0
    %1895 = vdwg.mxu0
    %1896 = vmatpush.bf16.msra.mxu0 %v1585
    %1897 = vmatpush.bf16.msra.mxu0 %v1581
    %1898 = vmatpush.bf16.msra.mxu0 %v1577
    %1899 = vmatpush.bf16.msra.mxu0 %v1573
    %1900 = vmatpush.bf16.msra.mxu0 %v1569
    %1901 = vmatpush.bf16.msra.mxu0 %v1565
    %1902 = vmatpush.bf16.msra.mxu0 %v1561
    %1903 = vmatpush.bf16.msra.mxu0 %v1557
    %1904 = vmatmul.bf16.gmra.mxu0 %v1008
    %v1905 = vpop.f32.mrf.mxu0
    %v1906 = vadd.f32 %v1893, %v1905
    %v1907 = vpop.f32.mrf.mxu0
    %1908 = vdwg.mxu0
    %1909 = vmatpush.bf16.msra.mxu0 %v1617
    %1910 = vmatpush.bf16.msra.mxu0 %v1613
    %1911 = vmatpush.bf16.msra.mxu0 %v1609
    %1912 = vmatpush.bf16.msra.mxu0 %v1605
    %1913 = vmatpush.bf16.msra.mxu0 %v1601
    %1914 = vmatpush.bf16.msra.mxu0 %v1597
    %1915 = vmatpush.bf16.msra.mxu0 %v1593
    %1916 = vmatpush.bf16.msra.mxu0 %v1589
    %1917 = vmatmul.bf16.gmra.mxu0 %v1009
    %v1918 = vpop.f32.mrf.mxu0
    %v1919 = vadd.f32 %v1906, %v1918
    %v1920 = vpop.f32.mrf.mxu0
    %1921 = vdwg.mxu0
    %1922 = vmatpush.bf16.msra.mxu0 %v1649
    %1923 = vmatpush.bf16.msra.mxu0 %v1645
    %1924 = vmatpush.bf16.msra.mxu0 %v1641
    %1925 = vmatpush.bf16.msra.mxu0 %v1637
    %1926 = vmatpush.bf16.msra.mxu0 %v1633
    %1927 = vmatpush.bf16.msra.mxu0 %v1629
    %1928 = vmatpush.bf16.msra.mxu0 %v1625
    %1929 = vmatpush.bf16.msra.mxu0 %v1621
    %1930 = vmatmul.bf16.gmra.mxu0 %v1010
    %v1931 = vpop.f32.mrf.mxu0
    %v1932 = vadd.f32 %v1919, %v1931
    %v1933 = vpop.f32.mrf.mxu0
    %1934 = vdwg.mxu0
    %1935 = vmatpush.bf16.msra.mxu0 %v1554
    %1936 = vmatpush.bf16.msra.mxu0 %v1550
    %1937 = vmatpush.bf16.msra.mxu0 %v1546
    %1938 = vmatpush.bf16.msra.mxu0 %v1542
    %1939 = vmatpush.bf16.msra.mxu0 %v1538
    %1940 = vmatpush.bf16.msra.mxu0 %v1534
    %1941 = vmatpush.bf16.msra.mxu0 %v1530
    %1942 = vmatpush.bf16.msra.mxu0 %v1526
    %1943 = vmatmul.bf16.gmra.mxu0 %v1007
    %v1944 = vpop.f32.mrf.mxu0
    %v1945 = vadd.f32 0.0, %v1944
    %v1946 = vpop.f32.mrf.mxu0
    %1947 = vdwg.mxu0
    %1948 = vmatpush.bf16.msra.mxu0 %v1586
    %1949 = vmatpush.bf16.msra.mxu0 %v1582
    %1950 = vmatpush.bf16.msra.mxu0 %v1578
    %1951 = vmatpush.bf16.msra.mxu0 %v1574
    %1952 = vmatpush.bf16.msra.mxu0 %v1570
    %1953 = vmatpush.bf16.msra.mxu0 %v1566
    %1954 = vmatpush.bf16.msra.mxu0 %v1562
    %1955 = vmatpush.bf16.msra.mxu0 %v1558
    %1956 = vmatmul.bf16.gmra.mxu0 %v1008
    %v1957 = vpop.f32.mrf.mxu0
    %v1958 = vadd.f32 %v1945, %v1957
    %v1959 = vpop.f32.mrf.mxu0
    %1960 = vdwg.mxu0
    %1961 = vmatpush.bf16.msra.mxu0 %v1618
    %1962 = vmatpush.bf16.msra.mxu0 %v1614
    %1963 = vmatpush.bf16.msra.mxu0 %v1610
    %1964 = vmatpush.bf16.msra.mxu0 %v1606
    %1965 = vmatpush.bf16.msra.mxu0 %v1602
    %1966 = vmatpush.bf16.msra.mxu0 %v1598
    %1967 = vmatpush.bf16.msra.mxu0 %v1594
    %1968 = vmatpush.bf16.msra.mxu0 %v1590
    %1969 = vmatmul.bf16.gmra.mxu0 %v1009
    %v1970 = vpop.f32.mrf.mxu0
    %v1971 = vadd.f32 %v1958, %v1970
    %v1972 = vpop.f32.mrf.mxu0
    %1973 = vdwg.mxu0
    %1974 = vmatpush.bf16.msra.mxu0 %v1650
    %1975 = vmatpush.bf16.msra.mxu0 %v1646
    %1976 = vmatpush.bf16.msra.mxu0 %v1642
    %1977 = vmatpush.bf16.msra.mxu0 %v1638
    %1978 = vmatpush.bf16.msra.mxu0 %v1634
    %1979 = vmatpush.bf16.msra.mxu0 %v1630
    %1980 = vmatpush.bf16.msra.mxu0 %v1626
    %1981 = vmatpush.bf16.msra.mxu0 %v1622
    %1982 = vmatmul.bf16.gmra.mxu0 %v1010
    %v1983 = vpop.f32.mrf.mxu0
    %v1984 = vadd.f32 %v1971, %v1983
    %v1985 = vpop.f32.mrf.mxu0
    %1986 = vdwg.mxu0
    %v1987 = vpack.c.bf16 %v1880, %v1828
    %v1988 = vpack.c.bf16 %v1984, %v1932
    %v1989 = vld [vmem:[%s10] sm:$0xf]
    %1991 = vst [vmem:[#allocation1] ss:$9 sm:$0xff] %v1989
    %v1992 = vld [vmem:[#allocation1] sm:$0xff]
    %v1993 = vld [vmem:[#allocation1 + $0x9] sm:$0xff]
    %v1994 = vld [vmem:[#allocation1 + $0x12] sm:$0xff]
    %v1995 = vld [vmem:[#allocation1 + $0x1b] sm:$0xff]
    %v1996 = vpack.i.b16 %v1992, %v1992
    %v1998 = vperm.slane %v1996, 0
    %v1999 = vpack.i.b16 %v1993, %v1993
    %v2001 = vperm.slane %v1999, 0
    %v2002 = vpack.i.b16 %v1994, %v1994
    %v2004 = vperm.slane %v2002, 0
    %v2005 = vpack.i.b16 %v1995, %v1995
    %v2007 = vperm.slane %v2005, 0
    %v2008 = vunpack.c.l.bf16 %v1987
    %v2009 = vunpack.c.h.bf16 %v1987
    %v2010 = vunpack.c.l.bf16 %v1988
    %v2011 = vunpack.c.h.bf16 %v1988
    %v2012 = vunpack.c.l.bf16 %v1998
    %v2013 = vunpack.c.l.bf16 %v2001
    %v2014 = vunpack.c.l.bf16 %v2004
    %v2015 = vunpack.c.l.bf16 %v2007
    %v2016 = vadd.f32 %v2008, %v2012
    %v2017 = vadd.f32 %v2009, %v2013
    %v2018 = vadd.f32 %v2010, %v2014
    %v2019 = vadd.f32 %v2011, %v2015
    %v2020 = vpack.c.bf16 %v2017, %v2016
    %v2021 = vpack.c.bf16 %v2019, %v2018
    %v2022 = vunpack.c.l.bf16 %v2020
    %v2023 = vunpack.c.h.bf16 %v2020
    %v2024 = vunpack.c.l.bf16 %v2021
    %v2025 = vunpack.c.h.bf16 %v2021
    %v2026 = vmax.f32 %v2022, 0.0
    %v2027 = vmax.f32 %v2023, 0.0
    %v2028 = vmax.f32 %v2024, 0.0
    %v2029 = vmax.f32 %v2025, 0.0
    %v2030 = vpack.c.bf16 %v2027, %v2026
    %v2031 = vpack.c.bf16 %v2029, %v2028
    %v2032 = vunpack.c.l.bf16 %v2030
    %v2033 = vunpack.c.h.bf16 %v2030
    %v2034 = vunpack.c.l.bf16 %v2031
    %v2035 = vunpack.c.h.bf16 %v2031
    %v2036 = vmin.f32 %v2032, 6.0
    %v2037 = vmin.f32 %v2033, 6.0
    %v2038 = vmin.f32 %v2034, 6.0
    %v2039 = vmin.f32 %v2035, 6.0
    %v2040 = vpack.c.bf16 %v2036, %v2036
    %v2041 = vpack.c.bf16 %v2037, %v2037
    %v2042 = vpack.c.bf16 %v2038, %v2038
    %v2043 = vpack.c.bf16 %v2039, %v2039
    %v2044 = vld [vmem:[#allocation18] sm:$0xf]
    %v2045 = vld [vmem:[#allocation18 + $0x4] sm:$0xf]
    %v2046 = vld [vmem:[#allocation18 + $0x8] sm:$0xf]
    %v2047 = vld [vmem:[#allocation18 + $0xc] sm:$0xf]
    %v2048 = vld [vmem:[#allocation18 + $0x10] sm:$0xf]
    %v2049 = vld [vmem:[#allocation18 + $0x14] sm:$0xf]
    %v2050 = vld [vmem:[#allocation18 + $0x18] sm:$0xf]
    %v2051 = vld [vmem:[#allocation18 + $0x1c] sm:$0xf]
    %v2052 = vld [vmem:[#allocation18 + $0x20] sm:$0xf]
    %v2053 = vld [vmem:[#allocation18 + $0x24] sm:$0xf]
    %v2054 = vld [vmem:[#allocation18 + $0x28] sm:$0xf]
    %v2055 = vld [vmem:[#allocation18 + $0x2c] sm:$0xf]
    %v2056 = vld [vmem:[#allocation18 + $0x30] sm:$0xf]
    %v2057 = vld [vmem:[#allocation18 + $0x34] sm:$0xf]
    %v2058 = vld [vmem:[#allocation18 + $0x38] sm:$0xf]
    %v2059 = vld [vmem:[#allocation18 + $0x3c] sm:$0xf]
    %v2060 = vld [vmem:[#allocation18 + $0x40] sm:$0xf]
    %v2061 = vld [vmem:[#allocation18 + $0x44] sm:$0xf]
    %v2062 = vld [vmem:[#allocation18 + $0x48] sm:$0xf]
    %v2063 = vld [vmem:[#allocation18 + $0x4c] sm:$0xf]
    %v2064 = vld [vmem:[#allocation18 + $0x50] sm:$0xf]
    %v2065 = vld [vmem:[#allocation18 + $0x54] sm:$0xf]
    %v2066 = vld [vmem:[#allocation18 + $0x58] sm:$0xf]
    %v2067 = vld [vmem:[#allocation18 + $0x5c] sm:$0xf]
    %v2068 = vld [vmem:[#allocation18 + $0x60] sm:$0xf]
    %v2069 = vld [vmem:[#allocation18 + $0x64] sm:$0xf]
    %v2070 = vld [vmem:[#allocation18 + $0x68] sm:$0xf]
    %v2071 = vld [vmem:[#allocation18 + $0x6c] sm:$0xf]
    %v2072 = vld [vmem:[#allocation18 + $0x70] sm:$0xf]
    %v2073 = vld [vmem:[#allocation18 + $0x74] sm:$0xf]
    %v2074 = vld [vmem:[#allocation18 + $0x78] sm:$0xf]
    %v2075 = vld [vmem:[#allocation18 + $0x7c] sm:$0xf]
    %v2076 = vld [vmem:[#allocation18 + $0x80] sm:$0xf]
    %v2077 = vld [vmem:[#allocation18 + $0x84] sm:$0xf]
    %v2078 = vld [vmem:[#allocation18 + $0x88] sm:$0xf]
    %v2079 = vld [vmem:[#allocation18 + $0x8c] sm:$0xf]
    %v2080 = vld [vmem:[#allocation18 + $0x90] sm:$0xf]
    %v2081 = vld [vmem:[#allocation18 + $0x94] sm:$0xf]
    %v2082 = vld [vmem:[#allocation18 + $0x98] sm:$0xf]
    %v2083 = vld [vmem:[#allocation18 + $0x9c] sm:$0xf]
    %v2084 = vld [vmem:[#allocation18 + $0xa0] sm:$0xf]
    %v2085 = vld [vmem:[#allocation18 + $0xa4] sm:$0xf]
    %v2086 = vld [vmem:[#allocation18 + $0xa8] sm:$0xf]
    %v2087 = vld [vmem:[#allocation18 + $0xac] sm:$0xf]
    %v2088 = vld [vmem:[#allocation18 + $0xb0] sm:$0xf]
    %v2089 = vld [vmem:[#allocation18 + $0xb4] sm:$0xf]
    %v2090 = vld [vmem:[#allocation18 + $0xb8] sm:$0xf]
    %v2091 = vld [vmem:[#allocation18 + $0xbc] sm:$0xf]
    %v2092 = vld [vmem:[#allocation18 + $0xc0] sm:$0xf]
    %v2093 = vld [vmem:[#allocation18 + $0xc4] sm:$0xf]
    %v2094 = vld [vmem:[#allocation18 + $0xc8] sm:$0xf]
    %v2095 = vld [vmem:[#allocation18 + $0xcc] sm:$0xf]
    %v2096 = vld [vmem:[#allocation18 + $0xd0] sm:$0xf]
    %v2097 = vld [vmem:[#allocation18 + $0xd4] sm:$0xf]
    %v2098 = vld [vmem:[#allocation18 + $0xd8] sm:$0xf]
    %v2099 = vld [vmem:[#allocation18 + $0xdc] sm:$0xf]
    %v2100 = vld [vmem:[#allocation18 + $0xe0] sm:$0xf]
    %v2101 = vld [vmem:[#allocation18 + $0xe4] sm:$0xf]
    %v2102 = vld [vmem:[#allocation18 + $0xe8] sm:$0xf]
    %v2103 = vld [vmem:[#allocation18 + $0xec] sm:$0xf]
    %v2104 = vld [vmem:[#allocation18 + $0xf0] sm:$0xf]
    %v2105 = vld [vmem:[#allocation18 + $0xf4] sm:$0xf]
    %v2106 = vld [vmem:[#allocation18 + $0xf8] sm:$0xf]
    %v2107 = vld [vmem:[#allocation18 + $0xfc] sm:$0xf]
    %v2108 = vld [vmem:[%s12] sm:$0x1]
    %v2110 = vperm.slane %v2108, 0
    %v2176 = vunpack.c.l.b16 %v2044
    %v2177 = vunpack.c.l.b16 %v2045
    %v2178 = vunpack.c.l.b16 %v2046
    %v2179 = vunpack.c.l.b16 %v2047
    %v2180 = vunpack.c.l.b16 %v2048
    %v2181 = vunpack.c.l.b16 %v2049
    %v2182 = vunpack.c.l.b16 %v2050
    %v2183 = vunpack.c.l.b16 %v2051
    %v2184 = vunpack.c.l.b16 %v2052
    %v2185 = vunpack.c.l.b16 %v2053
    %v2186 = vunpack.c.l.b16 %v2054
    %v2187 = vunpack.c.l.b16 %v2055
    %v2188 = vunpack.c.l.b16 %v2056
    %v2189 = vunpack.c.l.b16 %v2057
    %v2190 = vunpack.c.l.b16 %v2058
    %v2191 = vunpack.c.l.b16 %v2059
    %v2192 = vunpack.c.l.b16 %v2060
    %v2193 = vunpack.c.l.b16 %v2061
    %v2194 = vunpack.c.l.b16 %v2062
    %v2195 = vunpack.c.l.b16 %v2063
    %v2196 = vunpack.c.l.b16 %v2064
    %v2197 = vunpack.c.l.b16 %v2065
    %v2198 = vunpack.c.l.b16 %v2066
    %v2199 = vunpack.c.l.b16 %v2067
    %v2200 = vunpack.c.l.b16 %v2068
    %v2201 = vunpack.c.l.b16 %v2069
    %v2202 = vunpack.c.l.b16 %v2070
    %v2203 = vunpack.c.l.b16 %v2071
    %v2204 = vunpack.c.l.b16 %v2072
    %v2205 = vunpack.c.l.b16 %v2073
    %v2206 = vunpack.c.l.b16 %v2074
    %v2207 = vunpack.c.l.b16 %v2075
    %v2208 = vunpack.c.l.b16 %v2076
    %v2209 = vunpack.c.l.b16 %v2077
    %v2210 = vunpack.c.l.b16 %v2078
    %v2211 = vunpack.c.l.b16 %v2079
    %v2212 = vunpack.c.l.b16 %v2080
    %v2213 = vunpack.c.l.b16 %v2081
    %v2214 = vunpack.c.l.b16 %v2082
    %v2215 = vunpack.c.l.b16 %v2083
    %v2216 = vunpack.c.l.b16 %v2084
    %v2217 = vunpack.c.l.b16 %v2085
    %v2218 = vunpack.c.l.b16 %v2086
    %v2219 = vunpack.c.l.b16 %v2087
    %v2220 = vunpack.c.l.b16 %v2088
    %v2221 = vunpack.c.l.b16 %v2089
    %v2222 = vunpack.c.l.b16 %v2090
    %v2223 = vunpack.c.l.b16 %v2091
    %v2224 = vunpack.c.l.b16 %v2092
    %v2225 = vunpack.c.l.b16 %v2093
    %v2226 = vunpack.c.l.b16 %v2094
    %v2227 = vunpack.c.l.b16 %v2095
    %v2228 = vunpack.c.l.b16 %v2096
    %v2229 = vunpack.c.l.b16 %v2097
    %v2230 = vunpack.c.l.b16 %v2098
    %v2231 = vunpack.c.l.b16 %v2099
    %v2232 = vunpack.c.l.b16 %v2100
    %v2233 = vunpack.c.l.b16 %v2101
    %v2234 = vunpack.c.l.b16 %v2102
    %v2235 = vunpack.c.l.b16 %v2103
    %v2236 = vunpack.c.l.b16 %v2104
    %v2237 = vunpack.c.l.b16 %v2105
    %v2238 = vunpack.c.l.b16 %v2106
    %v2239 = vunpack.c.l.b16 %v2107
    %v2240 = vpack.c.b16 %v2177, %v2176
    %v2241 = vpack.c.b16 %v2179, %v2178
    %v2242 = vpack.c.b16 %v2181, %v2180
    %v2243 = vpack.c.b16 %v2183, %v2182
    %v2244 = vpack.c.b16 %v2185, %v2184
    %v2245 = vpack.c.b16 %v2187, %v2186
    %v2246 = vpack.c.b16 %v2189, %v2188
    %v2247 = vpack.c.b16 %v2191, %v2190
    %v2248 = vpack.c.b16 %v2193, %v2192
    %v2249 = vpack.c.b16 %v2195, %v2194
    %v2250 = vpack.c.b16 %v2197, %v2196
    %v2251 = vpack.c.b16 %v2199, %v2198
    %v2252 = vpack.c.b16 %v2201, %v2200
    %v2253 = vpack.c.b16 %v2203, %v2202
    %v2254 = vpack.c.b16 %v2205, %v2204
    %v2255 = vpack.c.b16 %v2207, %v2206
    %v2256 = vpack.c.b16 %v2209, %v2208
    %v2257 = vpack.c.b16 %v2211, %v2210
    %v2258 = vpack.c.b16 %v2213, %v2212
    %v2259 = vpack.c.b16 %v2215, %v2214
    %v2260 = vpack.c.b16 %v2217, %v2216
    %v2261 = vpack.c.b16 %v2219, %v2218
    %v2262 = vpack.c.b16 %v2221, %v2220
    %v2263 = vpack.c.b16 %v2223, %v2222
    %v2264 = vpack.c.b16 %v2225, %v2224
    %v2265 = vpack.c.b16 %v2227, %v2226
    %v2266 = vpack.c.b16 %v2229, %v2228
    %v2267 = vpack.c.b16 %v2231, %v2230
    %v2268 = vpack.c.b16 %v2233, %v2232
    %v2269 = vpack.c.b16 %v2235, %v2234
    %v2270 = vpack.c.b16 %v2237, %v2236
    %v2271 = vpack.c.b16 %v2239, %v2238
    %2304 = vmatpush.bf16.msra.mxu0 %v2247
    %2305 = vmatpush.bf16.msra.mxu0 %v2246
    %2306 = vmatpush.bf16.msra.mxu0 %v2245
    %2307 = vmatpush.bf16.msra.mxu0 %v2244
    %2308 = vmatpush.bf16.msra.mxu0 %v2243
    %2309 = vmatpush.bf16.msra.mxu0 %v2242
    %2310 = vmatpush.bf16.msra.mxu0 %v2241
    %2311 = vmatpush.bf16.msra.mxu0 %v2240
    %2312 = vmatmul.bf16.gmra.mxu0 %v2040
    %v2313 = vpop.f32.mrf.mxu0
    %v2314 = vadd.f32 %v2110, %v2313
    %v2315 = vpop.f32.mrf.mxu0
    %2316 = vdwg.mxu0
    %2317 = vmatpush.bf16.msra.mxu0 %v2255
    %2318 = vmatpush.bf16.msra.mxu0 %v2254
    %2319 = vmatpush.bf16.msra.mxu0 %v2253
    %2320 = vmatpush.bf16.msra.mxu0 %v2252
    %2321 = vmatpush.bf16.msra.mxu0 %v2251
    %2322 = vmatpush.bf16.msra.mxu0 %v2250
    %2323 = vmatpush.bf16.msra.mxu0 %v2249
    %2324 = vmatpush.bf16.msra.mxu0 %v2248
    %2325 = vmatmul.bf16.gmra.mxu0 %v2041
    %v2326 = vpop.f32.mrf.mxu0
    %v2327 = vadd.f32 %v2314, %v2326
    %v2328 = vpop.f32.mrf.mxu0
    %2329 = vdwg.mxu0
    %2330 = vmatpush.bf16.msra.mxu0 %v2263
    %2331 = vmatpush.bf16.msra.mxu0 %v2262
    %2332 = vmatpush.bf16.msra.mxu0 %v2261
    %2333 = vmatpush.bf16.msra.mxu0 %v2260
    %2334 = vmatpush.bf16.msra.mxu0 %v2259
    %2335 = vmatpush.bf16.msra.mxu0 %v2258
    %2336 = vmatpush.bf16.msra.mxu0 %v2257
    %2337 = vmatpush.bf16.msra.mxu0 %v2256
    %2338 = vmatmul.bf16.gmra.mxu0 %v2042
    %v2339 = vpop.f32.mrf.mxu0
    %v2340 = vadd.f32 %v2327, %v2339
    %v2341 = vpop.f32.mrf.mxu0
    %2342 = vdwg.mxu0
    %2343 = vmatpush.bf16.msra.mxu0 %v2271
    %2344 = vmatpush.bf16.msra.mxu0 %v2270
    %2345 = vmatpush.bf16.msra.mxu0 %v2269
    %2346 = vmatpush.bf16.msra.mxu0 %v2268
    %2347 = vmatpush.bf16.msra.mxu0 %v2267
    %2348 = vmatpush.bf16.msra.mxu0 %v2266
    %2349 = vmatpush.bf16.msra.mxu0 %v2265
    %2350 = vmatpush.bf16.msra.mxu0 %v2264
    %2351 = vmatmul.bf16.gmra.mxu0 %v2043
    %v2352 = vpop.f32.mrf.mxu0
    %v2353 = vadd.f32 %v2340, %v2352
    %v2354 = vpop.f32.mrf.mxu0
    %2355 = vdwg.mxu0
    %2356 = vst [vmem:[%s13] sm:$0xff] %v2353
    // Predicated region
    $region98: #{dqn_forward.1} parent=1 // pred_check
      _
    $region99: #{dqn_forward.1} parent=1 // pred_check_branch
      %2358 = sbr.rel (0) target = $region101
    $region100: #{dqn_forward.1} parent=1 // pred_region
      _
    $region101: #{dqn_forward.1} parent=1 // pred_fallthru
      _
    // Predicated region
    $region102: #{dqn_forward.1} parent=1 // pred_check
      _
    $region103: #{dqn_forward.1} parent=1 // pred_check_branch
      %2360 = sbr.rel (0) target = $region105
    $region104: #{dqn_forward.1} parent=1 // pred_region
      _
    $region105: #{dqn_forward.1} parent=1 // pred_fallthru
      _
    %2361 = vsyncpa [#allocation3], 1
    %2362 = vsyncpa [#allocation5], 1
    %2363 = vsyncpa [#allocation8], 1
    %2364 = vsyncpa [#allocation11], 1
    %2365 = vsyncpa [#allocation14], 1
    %2366 = vsyncpa [#allocation17], 1

</llo_original>
